<compile_context>
chip_gen: v7x
topology: tpu7x:2x2x1
jax: 0.10.0
libtpu: 0.0.40
codegen_flags: <defaults>
</compile_context>

<pallas_src>
import functools

import jax
import jax.numpy as jnp
from jax.experimental import pallas as pl
from jax.experimental.pallas import tpu as pltpu

POOL_KERNEL = 36  # nn.AvgPool2d(36): kernel = stride = 36, padding = 0


# ----------------------------- Pallas kernel -----------------------------

def _avgpool_kernel(x_ref, p_ref, o_ref, *, inv_area):
    # x_ref: (tile, k, W)  -> one full k-row band of pooling windows for `tile` rows.
    # p_ref: (W, Wo)       -> block-of-ones pooling matrix (zeros for trailing ragged lanes).
    rowsum = jnp.sum(x_ref[...], axis=1, dtype=jnp.float32)          # (tile, W) sublane reduce
    pooled = jnp.dot(rowsum, p_ref[...],                              # (tile, Wo) MXU segment-sum
                     preferred_element_type=jnp.float32)
    o_ref[...] = (pooled * inv_area).astype(o_ref.dtype)


# ----------------------------- helpers -----------------------------

def _roundup(x, m):
    return ((x + m - 1) // m) * m


def _pool_matrix(w, wo, k):
    """(w, wo) f32 matrix: P[j, c] = 1 iff lane j falls in output window c (zeros past wo*k)."""
    j = jax.lax.broadcasted_iota(jnp.int32, (w, wo), 0)
    c = jax.lax.broadcasted_iota(jnp.int32, (w, wo), 1)
    return ((j >= c * k) & (j < (c + 1) * k)).astype(jnp.float32)


def _pick_row_tile(rows, k, w, itemsize, budget_bytes=5 << 20):
    """Row tile (multiple of 8) sized against the PADDED per-buffer VMEM footprint."""
    sub_pack = 8 * max(1, 4 // itemsize)            # 8 for f32, 16 for bf16, 32 for int8
    padded_bytes_per_row = _roundup(k, sub_pack) * _roundup(w, 128) * itemsize
    max_tile = max(8, (budget_bytes // max(1, padded_bytes_per_row)) // 8 * 8)
    # keep >= ~4 grid steps when rows permit (v7x 2-TC sharding + pipelining overlap)
    target = _roundup(pl.cdiv(rows, 4), 8)
    tile = min(max_tile, max(8, target))
    tile = min(tile, _roundup(rows, 8))
    return tile


# ----------------------------- wrapper -----------------------------

def avg_pool2d(x, k=POOL_KERNEL):
    """Equivalent of nn.AvgPool2d(k)(x) for NCHW x (kernel = stride = k, no padding)."""
    B, C, H, W = x.shape
    assert H >= k and W >= k, "spatial dims must be at least the pool kernel (36)"
    Ho, Wo = H // k, W // k
    if H % k:
        # TODO(synk): a band-wise H index_map would avoid this (rare) trailing-row slice copy.
        x = x[:, :, :Ho * k, :]

    rows = B * C * Ho
    xv = x.reshape(rows, k, W)                      # pure view: no transpose, no inflation
    pool_mat = _pool_matrix(W, Wo, k)               # handles ragged W in-kernel (zero rows)

    tile = _pick_row_tile(rows, k, W, x.dtype.itemsize)
    grid = (pl.cdiv(rows, tile),)

    cost = pl.CostEstimate(
        flops=rows * k * W + 2 * rows * W * Wo,
        transcendentals=0,
        bytes_accessed=rows * k * W * x.dtype.itemsize
        + rows * Wo * x.dtype.itemsize
        + W * Wo * 4,
    )

    out = pl.pallas_call(
        functools.partial(_avgpool_kernel, inv_area=1.0 / (k * k)),
        out_shape=jax.ShapeDtypeStruct((rows, Wo), x.dtype),
        grid=grid,
        in_specs=[
            pl.BlockSpec((tile, k, W), lambda i: (i, 0, 0)),
            pl.BlockSpec((W, Wo), lambda i: (0, 0)),      # VMEM-resident pooling matrix
        ],
        out_specs=pl.BlockSpec((tile, Wo), lambda i: (i, 0)),
        compiler_params=pltpu.CompilerParams(dimension_semantics=("parallel",)),
        cost_estimate=cost,
    )(xv, pool_mat)
    return out.reshape(B, C, Ho, Wo)


def pool_3d_forward(x, out_size=None, kernel_size=None):
    # The PyTorch module's out_size / kernel_size args are unused by its forward;
    # it always applies AvgPool2d(36).
    del out_size, kernel_size
    return avg_pool2d(x, POOL_KERNEL)


def _reference(x, k=POOL_KERNEL):
    B, C, H, W = x.shape
    Ho, Wo = H // k, W // k
    xs = x[:, :, :Ho * k, :Wo * k].astype(jnp.float32)
    return xs.reshape(B, C, Ho, k, Wo, k).mean(axis=(3, 5)).astype(x.dtype)


# ----------------------------- main -----------------------------

if __name__ == "__main__":
    key = jax.random.PRNGKey(0)

    # Test 1: multi-step parallel grid. 144 = 4*36 -> 4x4 pooled output; rows = 2*32*4 = 256
    # -> tile 64, 4 grid steps, ~2.5 MiB padded per input buffer (double-buffered ~5 MiB).
    B, C, H, W = 2, 32, 144, 144
    k1, k2 = jax.random.split(key)
    x1 = jax.random.normal(k1, (B, C, H, W), dtype=jnp.float32)
    out1 = jax.block_until_ready(pool_3d_forward(x1))
    ref1 = _reference(x1)
    assert out1.shape == ref1.shape and out1.dtype == x1.dtype
    assert jnp.allclose(out1, ref1, atol=1e-4, rtol=1e-4), float(jnp.max(jnp.abs(out1 - ref1)))

    # Test 2: ragged width (W % 36 != 0, handled in-kernel) + partial last grid block
    # (rows = 6 with tile = 8: OOB rows masked on writeback).
    B, C, H, W = 1, 3, 72, 100
    x2 = jax.random.normal(k2, (B, C, H, W), dtype=jnp.float32)
    out2 = jax.block_until_ready(pool_3d_forward(x2))
    ref2 = _reference(x2)
    assert out2.shape == ref2.shape and out2.dtype == x2.dtype
    assert jnp.allclose(out2, ref2, atol=1e-4, rtol=1e-4), float(jnp.max(jnp.abs(out2 - ref2)))

    print("KERNEL_OK")
</pallas_src>

<mosaic_0001>
module attributes {stable_mosaic.version = 11 : i64} {
  func.func @_avgpool_kernel(%arg0: i32, %arg1: memref<64x36x144xf32, #tpu.memory_space<vmem>>, %arg2: memref<144x4xf32, #tpu.memory_space<vmem>>, %arg3: memref<64x4xf32, #tpu.memory_space<vmem>>) attributes {dimension_semantics = [#tpu.dimension_semantics<parallel>], iteration_bounds = array<i64: 4>, scalar_prefetch = 0 : i64, scratch_operands = 0 : i64, tpu.core_type = #tpu.core_type<tc>, window_params = [{transform_indices = @transform_0, window_bounds = array<i64: 64, 36, 144>}, {pipeline_mode = #tpu.pipeline_mode<synchronous>, transform_indices = @transform_1, window_bounds = array<i64: 144, 4>}, {transform_indices = @transform_2, window_bounds = array<i64: 64, 4>}]} {
    %c0 = arith.constant 0 : index
    %c0_0 = arith.constant 0 : index
    %c0_1 = arith.constant 0 : index
    %0 = vector.load %arg1[%c0, %c0_0, %c0_1] : memref<64x36x144xf32, #tpu.memory_space<vmem>>, vector<64x36x144xf32>
    %cst = arith.constant dense<0.000000e+00> : vector<64x144xf32>
    %1 = vector.multi_reduction <add>, %0, %cst [1] : vector<64x36x144xf32> to vector<64x144xf32>
    %c0_2 = arith.constant 0 : index
    %c0_3 = arith.constant 0 : index
    %2 = vector.load %arg2[%c0_2, %c0_3] : memref<144x4xf32, #tpu.memory_space<vmem>>, vector<144x4xf32>
    %cst_4 = arith.constant dense<0.000000e+00> : vector<64x4xf32>
    %3 = tpu.matmul %1, %2, %cst_4 {dimension_numbers = #tpu.dot_dimension_numbers<[1], [0], [0], [1], [0, 0, 1, 1], [], []>} : vector<64x144xf32>, vector<144x4xf32>, vector<64x4xf32> -> vector<64x4xf32>
    %cst_5 = arith.constant 7.71604944E-4 : f32
    %4 = vector.broadcast %cst_5 : f32 to vector<64x4xf32>
    %5 = arith.mulf %3, %4 : vector<64x4xf32>
    %c0_6 = arith.constant 0 : index
    %c0_7 = arith.constant 0 : index
    %6 = vector.load %arg3[%c0_6, %c0_7] : memref<64x4xf32, #tpu.memory_space<vmem>>, vector<64x4xf32>
    tpu.vector_store %arg3[%c0_6, %c0_7], %5 {strides = array<i32>} : memref<64x4xf32, #tpu.memory_space<vmem>>, vector<64x4xf32>,
    return
  }
  func.func @transform_0(%arg0: i32) -> (i32, i32, i32) {
    %c0_i32 = arith.constant 0 : i32
    %c0_i32_0 = arith.constant 0 : i32
    %c0_i32_1 = arith.constant 0 : i32
    return %arg0, %c0_i32, %c0_i32_0 : i32, i32, i32
  }
  func.func @transform_1(%arg0: i32) -> (i32, i32) {
    %c0_i32 = arith.constant 0 : i32
    %c0_i32_0 = arith.constant 0 : i32
    %c0_i32_1 = arith.constant 0 : i32
    return %c0_i32, %c0_i32_0 : i32, i32
  }
  func.func @transform_2(%arg0: i32) -> (i32, i32) {
    %c0_i32 = arith.constant 0 : i32
    %c0_i32_0 = arith.constant 0 : i32
    return %arg0, %c0_i32 : i32, i32
  }
}

</mosaic_0001>

<llo_original>
// kernel: tpu_custom_call.1
$region0: #{tpu_custom_call.1}
  #allocation0 [shape = 'u32[]', space=smem, size = 0x4, offset = 0x4, fixed_abs, tag = 'smem constant byte address 0x4 - core index']
  #allocation1 [shape = 'u32[144,128]{1,0:T(1,128)}', space=vmem, size = 0x12000, scoped, tag = 'internal scratch']
  %s0 = inlined_call_operand.vmem [shape: f32[256,36,144], index: 0, kind: input, shape index: {}]
  %s1 = inlined_call_operand.vmem [shape: f32[144,4], index: 1, kind: input, shape index: {}]
  %s2 = inlined_call_operand.vmem [shape: f32[256,4], index: 2, kind: output, shape index: {}]
  %s3 = sld [smem:[#allocation0]]
  $region41: #{tpu_custom_call.1} parent=0
    _
  %s5 = ssub.s32 1, %s3
  %s6 = scalar_select 0, %s5, %s3
  loop: start=0, step=1, limit=6
  $region2: #{tpu_custom_call.1} parent=0 // loop_pre_header
    _
  $region3: #{tpu_custom_call.1} parent=0 // loop_header
    %s8 = sphi 0, %s12
    %p9 = scmp.ge.s32.totalorder %s8, 6
    %s18 = sphi 0, %s20
    %s21 = sphi 0, %s18
    %s22 = sphi 0, %s21
    %s38 = sphi 0, %s22
    %s42 = sphi 0, %s42
    %s44 = sphi 0, %s42
    %s45 = sphi 0, %s44
    %s59 = sphi 0, %s45
    %s65 = sphi 0, %s67
    %s68 = sphi 0, %s65
    %s69 = sphi 0, %s68
    %s85 = sphi 0, %s69
  $region4: #{tpu_custom_call.1} parent=0 // loop_header_branch
    %11 = sbr.rel (%p9) target = $region8
  $region5: #{tpu_custom_call.1} parent=0 // loop_body
    %s13 = ssub.s32 %s8, 1
    %s14 = ssub.s32 %s8, 2
    %s15 = sadd.s32 %s8, 1
    %s16 = ssub.s32 %s8, %s15
    %p17 = scmp.eq.s32.totalorder %s16, 0
    %s19 = sadd.s32 %s18, 1
    %s20 = scalar_select %p17, %s18, %s19
    %p23 = pneg %p17
    %p24 = scmp.eq.s32.totalorder %s8, 3
    %p25 = por %p23, %p24
    %p26 = scmp.ne.s32.totalorder %s18, %s21
    %p27 = scmp.eq.s32.totalorder %s8, 0
    %p28 = por %p26, %p27
    %p29 = scmp.ne.s32.totalorder %s18, %s21
    %p30 = scmp.eq.s32.totalorder %s13, 3
    %p31 = por %p29, %p30
    %p32 = scmp.ne.s32.totalorder %s21, %s22
    %p33 = scmp.eq.s32.totalorder %s13, 0
    %p34 = por %p32, %p33
    %p35 = scmp.ne.s32.totalorder %s21, %s22
    %p36 = scmp.eq.s32.totalorder %s14, 3
    %p37 = por %p35, %p36
    %p39 = scmp.ne.s32.totalorder %s22, %s38
    %p40 = scmp.eq.s32.totalorder %s14, 0
    %p41 = por %p39, %p40
    %s43 = sadd.s32 %s42, 1
    %p46 = scmp.eq.s32.totalorder %s8, 3
    %p47 = scmp.ne.s32.totalorder %s42, %s44
    %p48 = scmp.eq.s32.totalorder %s8, 0
    %p49 = por %p47, %p48
    %p50 = scmp.ne.s32.totalorder %s42, %s44
    %p51 = scmp.eq.s32.totalorder %s13, 3
    %p52 = por %p50, %p51
    %p53 = scmp.ne.s32.totalorder %s44, %s45
    %p54 = scmp.eq.s32.totalorder %s13, 0
    %p55 = por %p53, %p54
    %p56 = scmp.ne.s32.totalorder %s44, %s45
    %p57 = scmp.eq.s32.totalorder %s14, 3
    %p58 = por %p56, %p57
    %p60 = scmp.ne.s32.totalorder %s45, %s59
    %p61 = scmp.eq.s32.totalorder %s14, 0
    %p62 = por %p60, %p61
    %s63 = ssub.s32 %s8, %s15
    %p64 = scmp.eq.s32.totalorder %s63, 0
    %s66 = sadd.s32 %s65, 1
    %s67 = scalar_select %p64, %s65, %s66
    %p70 = pneg %p64
    %p71 = scmp.eq.s32.totalorder %s8, 3
    %p72 = por %p70, %p71
    %p73 = scmp.ne.s32.totalorder %s65, %s68
    %p74 = scmp.eq.s32.totalorder %s8, 0
    %p75 = por %p73, %p74
    %p76 = scmp.ne.s32.totalorder %s65, %s68
    %p77 = scmp.eq.s32.totalorder %s13, 3
    %p78 = por %p76, %p77
    %p79 = scmp.ne.s32.totalorder %s68, %s69
    %p80 = scmp.eq.s32.totalorder %s13, 0
    %p81 = por %p79, %p80
    %p82 = scmp.ne.s32.totalorder %s68, %s69
    %p83 = scmp.eq.s32.totalorder %s14, 3
    %p84 = por %p82, %p83
    %p86 = scmp.ne.s32.totalorder %s69, %s85
    %p87 = scmp.eq.s32.totalorder %s14, 0
    %p88 = por %p86, %p87
    %p89 = scmp.le.s32.totalorder 1, %s8
    %p90 = scmp.lt.s32.totalorder %s8, 5
    %p91 = pnand %p89, %p90
    %p92 = pneg %p91
    // Predicated region
    $region9: #{tpu_custom_call.1} parent=5 // pred_check
      _
    $region10: #{tpu_custom_call.1} parent=5 // pred_check_branch
      %94 = sbr.rel (%p91) target = $region12
    $region11: #{tpu_custom_call.1} parent=5 // pred_region
      %s95 = ssub.s32 %s8, 1
      // Predicated region
      $region13: #{tpu_custom_call.1} parent=11 // pred_check
        %p96 = pneg %p55
      $region14: #{tpu_custom_call.1} parent=11 // pred_check_branch
        %98 = sbr.rel (%p96) target = $region16
      $region15: #{tpu_custom_call.1} parent=11 // pred_region
        _
      $region16: #{tpu_custom_call.1} parent=11 // pred_fallthru
        _
    $region12: #{tpu_custom_call.1} parent=5 // pred_fallthru
      _
    %p99 = scmp.lt.s32.totalorder %s8, 4
    // Predicated region
    $region17: #{tpu_custom_call.1} parent=5 // pred_check
      %p100 = pneg %p99
    $region18: #{tpu_custom_call.1} parent=5 // pred_check_branch
      %102 = sbr.rel (%p100) target = $region20
    $region19: #{tpu_custom_call.1} parent=5 // pred_region
      // Predicated region
      $region21: #{tpu_custom_call.1} parent=19 // pred_check
        %p103 = pneg %p28
      $region22: #{tpu_custom_call.1} parent=19 // pred_check_branch
        %105 = sbr.rel (%p103) target = $region24
      $region23: #{tpu_custom_call.1} parent=19 // pred_region
        %s106 = smul.u32 64, %s8
        %p107 = scmp.lt.s32.totalorder %s106, 255
        %s108 = scalar_select %p107, %s106, 255
        %s109 = smul.addr %s108, 10
        %s110 = smul.addr %s109, 8
        %s111 = scalar_lea.vmem %s0, %s110
        %s112 = smul.u32 64, %s8
      $region24: #{tpu_custom_call.1} parent=19 // pred_fallthru
        _
    $region20: #{tpu_custom_call.1} parent=5 // pred_fallthru
      _
    %p113 = scmp.le.s32.totalorder 1, %s8
    %p114 = scmp.lt.s32.totalorder %s8, 5
    %p115 = pnand %p113, %p114
    %p116 = pneg %p115
    // Predicated region
    $region25: #{tpu_custom_call.1} parent=5 // pred_check
      _
    $region26: #{tpu_custom_call.1} parent=5 // pred_check_branch
      %118 = sbr.rel (%p115) target = $region28
    $region27: #{tpu_custom_call.1} parent=5 // pred_region
      %s119 = ssub.s32 %s8, 1
      %s120 = smul.u32 64, %s13
      %p121 = scmp.lt.s32.totalorder %s120, 255
      %s122 = scalar_select %p121, %s120, 255
      %s123 = smul.addr %s122, 10
      %s124 = smul.addr %s123, 8
      %s125 = scalar_lea.vmem %s0, %s124
      %p126 = pneg %p34
      %p127 = pneg %p31
      %p128 = pneg %p55
      %p129 = pneg %p52
      %p130 = pneg %p81
      %p131 = pneg %p78
      %s132 = smul.u32 8, %s13
      %p133 = scmp.lt.s32.totalorder %s132, 31
      %s134 = scalar_select %p133, %s132, 31
      %s135 = smul.addr %s134, 8
      %s136 = scalar_lea.vmem %s2, %s135
      %s137 = smul.u32 64, %s13
      %p138 = scmp.lt.s32.totalorder %s137, 255
      %s139 = scalar_select %p138, %s137, 255
      %s140 = smul.addr %s139, 10
      %s141 = smul.addr %s140, 8
      %s142 = scalar_lea.vmem %s0, %s141
      %s143 = smul.u32 64, %s13
      %s144 = smul.u32 8, %s13
      %p145 = scmp.lt.s32.totalorder %s144, 31
      %s146 = scalar_select %p145, %s144, 31
      %s147 = smul.addr %s146, 8
      %s148 = scalar_lea.vmem %s2, %s147
      %s149 = smul.u32 8, %s13
      %v150 = vld [vmem:[%s142] sm:$0xff]
      %v151 = vld [vmem:[%s142 + $0x8] sm:$0xff]
      %v152 = vld [vmem:[%s142 + $0x10] sm:$0xff]
      %v153 = vld [vmem:[%s142 + $0x18] sm:$0xff]
      %v154 = vld [vmem:[%s142 + $0x20] sm:$0xff]
      %v155 = vld [vmem:[%s142 + $0x28] sm:$0xff]
      %v156 = vld [vmem:[%s142 + $0x30] sm:$0xff]
      %v157 = vld [vmem:[%s142 + $0x38] sm:$0xff]
      %v158 = vld [vmem:[%s142 + $0x40] sm:$0xf]
      %v159 = vld [vmem:[%s142 + $0x48] sm:$0xf]
      %v160 = vld [vmem:[%s142 + $0x50] sm:$0xff]
      %v161 = vld [vmem:[%s142 + $0x58] sm:$0xff]
      %v162 = vld [vmem:[%s142 + $0x60] sm:$0xff]
      %v163 = vld [vmem:[%s142 + $0x68] sm:$0xff]
      %v164 = vld [vmem:[%s142 + $0x70] sm:$0xff]
      %v165 = vld [vmem:[%s142 + $0x78] sm:$0xff]
      %v166 = vld [vmem:[%s142 + $0x80] sm:$0xff]
      %v167 = vld [vmem:[%s142 + $0x88] sm:$0xff]
      %v168 = vld [vmem:[%s142 + $0x90] sm:$0xf]
      %v169 = vld [vmem:[%s142 + $0x98] sm:$0xf]
      %v170 = vld [vmem:[%s142 + $0xa0] sm:$0xff]
      %v171 = vld [vmem:[%s142 + $0xa8] sm:$0xff]
      %v172 = vld [vmem:[%s142 + $0xb0] sm:$0xff]
      %v173 = vld [vmem:[%s142 + $0xb8] sm:$0xff]
      %v174 = vld [vmem:[%s142 + $0xc0] sm:$0xff]
      %v175 = vld [vmem:[%s142 + $0xc8] sm:$0xff]
      %v176 = vld [vmem:[%s142 + $0xd0] sm:$0xff]
      %v177 = vld [vmem:[%s142 + $0xd8] sm:$0xff]
      %v178 = vld [vmem:[%s142 + $0xe0] sm:$0xf]
      %v179 = vld [vmem:[%s142 + $0xe8] sm:$0xf]
      %v180 = vld [vmem:[%s142 + $0xf0] sm:$0xff]
      %v181 = vld [vmem:[%s142 + $0xf8] sm:$0xff]
      %v182 = vld [vmem:[%s142 + $0x100] sm:$0xff]
      %v183 = vld [vmem:[%s142 + $0x108] sm:$0xff]
      %v184 = vld [vmem:[%s142 + $0x110] sm:$0xff]
      %v185 = vld [vmem:[%s142 + $0x118] sm:$0xff]
      %v186 = vld [vmem:[%s142 + $0x120] sm:$0xff]
      %v187 = vld [vmem:[%s142 + $0x128] sm:$0xff]
      %v188 = vld [vmem:[%s142 + $0x130] sm:$0xf]
      %v189 = vld [vmem:[%s142 + $0x138] sm:$0xf]
      %v190 = vld [vmem:[%s142 + $0x140] sm:$0xff]
      %v191 = vld [vmem:[%s142 + $0x148] sm:$0xff]
      %v192 = vld [vmem:[%s142 + $0x150] sm:$0xff]
      %v193 = vld [vmem:[%s142 + $0x158] sm:$0xff]
      %v194 = vld [vmem:[%s142 + $0x160] sm:$0xff]
      %v195 = vld [vmem:[%s142 + $0x168] sm:$0xff]
      %v196 = vld [vmem:[%s142 + $0x170] sm:$0xff]
      %v197 = vld [vmem:[%s142 + $0x178] sm:$0xff]
      %v198 = vld [vmem:[%s142 + $0x180] sm:$0xf]
      %v199 = vld [vmem:[%s142 + $0x188] sm:$0xf]
      %v200 = vld [vmem:[%s142 + $0x190] sm:$0xff]
      %v201 = vld [vmem:[%s142 + $0x198] sm:$0xff]
      %v202 = vld [vmem:[%s142 + $0x1a0] sm:$0xff]
      %v203 = vld [vmem:[%s142 + $0x1a8] sm:$0xff]
      %v204 = vld [vmem:[%s142 + $0x1b0] sm:$0xff]
      %v205 = vld [vmem:[%s142 + $0x1b8] sm:$0xff]
      %v206 = vld [vmem:[%s142 + $0x1c0] sm:$0xff]
      %v207 = vld [vmem:[%s142 + $0x1c8] sm:$0xff]
      %v208 = vld [vmem:[%s142 + $0x1d0] sm:$0xf]
      %v209 = vld [vmem:[%s142 + $0x1d8] sm:$0xf]
      %v210 = vld [vmem:[%s142 + $0x1e0] sm:$0xff]
      %v211 = vld [vmem:[%s142 + $0x1e8] sm:$0xff]
      %v212 = vld [vmem:[%s142 + $0x1f0] sm:$0xff]
      %v213 = vld [vmem:[%s142 + $0x1f8] sm:$0xff]
      %v214 = vld [vmem:[%s142 + $0x200] sm:$0xff]
      %v215 = vld [vmem:[%s142 + $0x208] sm:$0xff]
      %v216 = vld [vmem:[%s142 + $0x210] sm:$0xff]
      %v217 = vld [vmem:[%s142 + $0x218] sm:$0xff]
      %v218 = vld [vmem:[%s142 + $0x220] sm:$0xf]
      %v219 = vld [vmem:[%s142 + $0x228] sm:$0xf]
      %v220 = vld [vmem:[%s142 + $0x230] sm:$0xff]
      %v221 = vld [vmem:[%s142 + $0x238] sm:$0xff]
      %v222 = vld [vmem:[%s142 + $0x240] sm:$0xff]
      %v223 = vld [vmem:[%s142 + $0x248] sm:$0xff]
      %v224 = vld [vmem:[%s142 + $0x250] sm:$0xff]
      %v225 = vld [vmem:[%s142 + $0x258] sm:$0xff]
      %v226 = vld [vmem:[%s142 + $0x260] sm:$0xff]
      %v227 = vld [vmem:[%s142 + $0x268] sm:$0xff]
      %v228 = vld [vmem:[%s142 + $0x270] sm:$0xf]
      %v229 = vld [vmem:[%s142 + $0x278] sm:$0xf]
      %v230 = vld [vmem:[%s142 + $0x280] sm:$0xff]
      %v231 = vld [vmem:[%s142 + $0x288] sm:$0xff]
      %v232 = vld [vmem:[%s142 + $0x290] sm:$0xff]
      %v233 = vld [vmem:[%s142 + $0x298] sm:$0xff]
      %v234 = vld [vmem:[%s142 + $0x2a0] sm:$0xff]
      %v235 = vld [vmem:[%s142 + $0x2a8] sm:$0xff]
      %v236 = vld [vmem:[%s142 + $0x2b0] sm:$0xff]
      %v237 = vld [vmem:[%s142 + $0x2b8] sm:$0xff]
      %v238 = vld [vmem:[%s142 + $0x2c0] sm:$0xf]
      %v239 = vld [vmem:[%s142 + $0x2c8] sm:$0xf]
      %v240 = vld [vmem:[%s142 + $0x2d0] sm:$0xff]
      %v241 = vld [vmem:[%s142 + $0x2d8] sm:$0xff]
      %v242 = vld [vmem:[%s142 + $0x2e0] sm:$0xff]
      %v243 = vld [vmem:[%s142 + $0x2e8] sm:$0xff]
      %v244 = vld [vmem:[%s142 + $0x2f0] sm:$0xff]
      %v245 = vld [vmem:[%s142 + $0x2f8] sm:$0xff]
      %v246 = vld [vmem:[%s142 + $0x300] sm:$0xff]
      %v247 = vld [vmem:[%s142 + $0x308] sm:$0xff]
      %v248 = vld [vmem:[%s142 + $0x310] sm:$0xf]
      %v249 = vld [vmem:[%s142 + $0x318] sm:$0xf]
      %v250 = vld [vmem:[%s142 + $0x320] sm:$0xff]
      %v251 = vld [vmem:[%s142 + $0x328] sm:$0xff]
      %v252 = vld [vmem:[%s142 + $0x330] sm:$0xff]
      %v253 = vld [vmem:[%s142 + $0x338] sm:$0xff]
      %v254 = vld [vmem:[%s142 + $0x340] sm:$0xff]
      %v255 = vld [vmem:[%s142 + $0x348] sm:$0xff]
      %v256 = vld [vmem:[%s142 + $0x350] sm:$0xff]
      %v257 = vld [vmem:[%s142 + $0x358] sm:$0xff]
      %v258 = vld [vmem:[%s142 + $0x360] sm:$0xf]
      %v259 = vld [vmem:[%s142 + $0x368] sm:$0xf]
      %v260 = vld [vmem:[%s142 + $0x370] sm:$0xff]
      %v261 = vld [vmem:[%s142 + $0x378] sm:$0xff]
      %v262 = vld [vmem:[%s142 + $0x380] sm:$0xff]
      %v263 = vld [vmem:[%s142 + $0x388] sm:$0xff]
      %v264 = vld [vmem:[%s142 + $0x390] sm:$0xff]
      %v265 = vld [vmem:[%s142 + $0x398] sm:$0xff]
      %v266 = vld [vmem:[%s142 + $0x3a0] sm:$0xff]
      %v267 = vld [vmem:[%s142 + $0x3a8] sm:$0xff]
      %v268 = vld [vmem:[%s142 + $0x3b0] sm:$0xf]
      %v269 = vld [vmem:[%s142 + $0x3b8] sm:$0xf]
      %v270 = vld [vmem:[%s142 + $0x3c0] sm:$0xff]
      %v271 = vld [vmem:[%s142 + $0x3c8] sm:$0xff]
      %v272 = vld [vmem:[%s142 + $0x3d0] sm:$0xff]
      %v273 = vld [vmem:[%s142 + $0x3d8] sm:$0xff]
      %v274 = vld [vmem:[%s142 + $0x3e0] sm:$0xff]
      %v275 = vld [vmem:[%s142 + $0x3e8] sm:$0xff]
      %v276 = vld [vmem:[%s142 + $0x3f0] sm:$0xff]
      %v277 = vld [vmem:[%s142 + $0x3f8] sm:$0xff]
      %v278 = vld [vmem:[%s142 + $0x400] sm:$0xf]
      %v279 = vld [vmem:[%s142 + $0x408] sm:$0xf]
      %v280 = vld [vmem:[%s142 + $0x410] sm:$0xff]
      %v281 = vld [vmem:[%s142 + $0x418] sm:$0xff]
      %v282 = vld [vmem:[%s142 + $0x420] sm:$0xff]
      %v283 = vld [vmem:[%s142 + $0x428] sm:$0xff]
      %v284 = vld [vmem:[%s142 + $0x430] sm:$0xff]
      %v285 = vld [vmem:[%s142 + $0x438] sm:$0xff]
      %v286 = vld [vmem:[%s142 + $0x440] sm:$0xff]
      %v287 = vld [vmem:[%s142 + $0x448] sm:$0xff]
      %v288 = vld [vmem:[%s142 + $0x450] sm:$0xf]
      %v289 = vld [vmem:[%s142 + $0x458] sm:$0xf]
      %v290 = vld [vmem:[%s142 + $0x460] sm:$0xff]
      %v291 = vld [vmem:[%s142 + $0x468] sm:$0xff]
      %v292 = vld [vmem:[%s142 + $0x470] sm:$0xff]
      %v293 = vld [vmem:[%s142 + $0x478] sm:$0xff]
      %v294 = vld [vmem:[%s142 + $0x480] sm:$0xff]
      %v295 = vld [vmem:[%s142 + $0x488] sm:$0xff]
      %v296 = vld [vmem:[%s142 + $0x490] sm:$0xff]
      %v297 = vld [vmem:[%s142 + $0x498] sm:$0xff]
      %v298 = vld [vmem:[%s142 + $0x4a0] sm:$0xf]
      %v299 = vld [vmem:[%s142 + $0x4a8] sm:$0xf]
      %v300 = vld [vmem:[%s142 + $0x4b0] sm:$0xff]
      %v301 = vld [vmem:[%s142 + $0x4b8] sm:$0xff]
      %v302 = vld [vmem:[%s142 + $0x4c0] sm:$0xff]
      %v303 = vld [vmem:[%s142 + $0x4c8] sm:$0xff]
      %v304 = vld [vmem:[%s142 + $0x4d0] sm:$0xff]
      %v305 = vld [vmem:[%s142 + $0x4d8] sm:$0xff]
      %v306 = vld [vmem:[%s142 + $0x4e0] sm:$0xff]
      %v307 = vld [vmem:[%s142 + $0x4e8] sm:$0xff]
      %v308 = vld [vmem:[%s142 + $0x4f0] sm:$0xf]
      %v309 = vld [vmem:[%s142 + $0x4f8] sm:$0xf]
      %v310 = vld [vmem:[%s142 + $0x500] sm:$0xff]
      %v311 = vld [vmem:[%s142 + $0x508] sm:$0xff]
      %v312 = vld [vmem:[%s142 + $0x510] sm:$0xff]
      %v313 = vld [vmem:[%s142 + $0x518] sm:$0xff]
      %v314 = vld [vmem:[%s142 + $0x520] sm:$0xff]
      %v315 = vld [vmem:[%s142 + $0x528] sm:$0xff]
      %v316 = vld [vmem:[%s142 + $0x530] sm:$0xff]
      %v317 = vld [vmem:[%s142 + $0x538] sm:$0xff]
      %v318 = vld [vmem:[%s142 + $0x540] sm:$0xf]
      %v319 = vld [vmem:[%s142 + $0x548] sm:$0xf]
      %v320 = vld [vmem:[%s142 + $0x550] sm:$0xff]
      %v321 = vld [vmem:[%s142 + $0x558] sm:$0xff]
      %v322 = vld [vmem:[%s142 + $0x560] sm:$0xff]
      %v323 = vld [vmem:[%s142 + $0x568] sm:$0xff]
      %v324 = vld [vmem:[%s142 + $0x570] sm:$0xff]
      %v325 = vld [vmem:[%s142 + $0x578] sm:$0xff]
      %v326 = vld [vmem:[%s142 + $0x580] sm:$0xff]
      %v327 = vld [vmem:[%s142 + $0x588] sm:$0xff]
      %v328 = vld [vmem:[%s142 + $0x590] sm:$0xf]
      %v329 = vld [vmem:[%s142 + $0x598] sm:$0xf]
      %v330 = vld [vmem:[%s142 + $0x5a0] sm:$0xff]
      %v331 = vld [vmem:[%s142 + $0x5a8] sm:$0xff]
      %v332 = vld [vmem:[%s142 + $0x5b0] sm:$0xff]
      %v333 = vld [vmem:[%s142 + $0x5b8] sm:$0xff]
      %v334 = vld [vmem:[%s142 + $0x5c0] sm:$0xff]
      %v335 = vld [vmem:[%s142 + $0x5c8] sm:$0xff]
      %v336 = vld [vmem:[%s142 + $0x5d0] sm:$0xff]
      %v337 = vld [vmem:[%s142 + $0x5d8] sm:$0xff]
      %v338 = vld [vmem:[%s142 + $0x5e0] sm:$0xf]
      %v339 = vld [vmem:[%s142 + $0x5e8] sm:$0xf]
      %v340 = vld [vmem:[%s142 + $0x5f0] sm:$0xff]
      %v341 = vld [vmem:[%s142 + $0x5f8] sm:$0xff]
      %v342 = vld [vmem:[%s142 + $0x600] sm:$0xff]
      %v343 = vld [vmem:[%s142 + $0x608] sm:$0xff]
      %v344 = vld [vmem:[%s142 + $0x610] sm:$0xff]
      %v345 = vld [vmem:[%s142 + $0x618] sm:$0xff]
      %v346 = vld [vmem:[%s142 + $0x620] sm:$0xff]
      %v347 = vld [vmem:[%s142 + $0x628] sm:$0xff]
      %v348 = vld [vmem:[%s142 + $0x630] sm:$0xf]
      %v349 = vld [vmem:[%s142 + $0x638] sm:$0xf]
      %v350 = vld [vmem:[%s142 + $0x640] sm:$0xff]
      %v351 = vld [vmem:[%s142 + $0x648] sm:$0xff]
      %v352 = vld [vmem:[%s142 + $0x650] sm:$0xff]
      %v353 = vld [vmem:[%s142 + $0x658] sm:$0xff]
      %v354 = vld [vmem:[%s142 + $0x660] sm:$0xff]
      %v355 = vld [vmem:[%s142 + $0x668] sm:$0xff]
      %v356 = vld [vmem:[%s142 + $0x670] sm:$0xff]
      %v357 = vld [vmem:[%s142 + $0x678] sm:$0xff]
      %v358 = vld [vmem:[%s142 + $0x680] sm:$0xf]
      %v359 = vld [vmem:[%s142 + $0x688] sm:$0xf]
      %v360 = vld [vmem:[%s142 + $0x690] sm:$0xff]
      %v361 = vld [vmem:[%s142 + $0x698] sm:$0xff]
      %v362 = vld [vmem:[%s142 + $0x6a0] sm:$0xff]
      %v363 = vld [vmem:[%s142 + $0x6a8] sm:$0xff]
      %v364 = vld [vmem:[%s142 + $0x6b0] sm:$0xff]
      %v365 = vld [vmem:[%s142 + $0x6b8] sm:$0xff]
      %v366 = vld [vmem:[%s142 + $0x6c0] sm:$0xff]
      %v367 = vld [vmem:[%s142 + $0x6c8] sm:$0xff]
      %v368 = vld [vmem:[%s142 + $0x6d0] sm:$0xf]
      %v369 = vld [vmem:[%s142 + $0x6d8] sm:$0xf]
      %v370 = vld [vmem:[%s142 + $0x6e0] sm:$0xff]
      %v371 = vld [vmem:[%s142 + $0x6e8] sm:$0xff]
      %v372 = vld [vmem:[%s142 + $0x6f0] sm:$0xff]
      %v373 = vld [vmem:[%s142 + $0x6f8] sm:$0xff]
      %v374 = vld [vmem:[%s142 + $0x700] sm:$0xff]
      %v375 = vld [vmem:[%s142 + $0x708] sm:$0xff]
      %v376 = vld [vmem:[%s142 + $0x710] sm:$0xff]
      %v377 = vld [vmem:[%s142 + $0x718] sm:$0xff]
      %v378 = vld [vmem:[%s142 + $0x720] sm:$0xf]
      %v379 = vld [vmem:[%s142 + $0x728] sm:$0xf]
      %v380 = vld [vmem:[%s142 + $0x730] sm:$0xff]
      %v381 = vld [vmem:[%s142 + $0x738] sm:$0xff]
      %v382 = vld [vmem:[%s142 + $0x740] sm:$0xff]
      %v383 = vld [vmem:[%s142 + $0x748] sm:$0xff]
      %v384 = vld [vmem:[%s142 + $0x750] sm:$0xff]
      %v385 = vld [vmem:[%s142 + $0x758] sm:$0xff]
      %v386 = vld [vmem:[%s142 + $0x760] sm:$0xff]
      %v387 = vld [vmem:[%s142 + $0x768] sm:$0xff]
      %v388 = vld [vmem:[%s142 + $0x770] sm:$0xf]
      %v389 = vld [vmem:[%s142 + $0x778] sm:$0xf]
      %v390 = vld [vmem:[%s142 + $0x780] sm:$0xff]
      %v391 = vld [vmem:[%s142 + $0x788] sm:$0xff]
      %v392 = vld [vmem:[%s142 + $0x790] sm:$0xff]
      %v393 = vld [vmem:[%s142 + $0x798] sm:$0xff]
      %v394 = vld [vmem:[%s142 + $0x7a0] sm:$0xff]
      %v395 = vld [vmem:[%s142 + $0x7a8] sm:$0xff]
      %v396 = vld [vmem:[%s142 + $0x7b0] sm:$0xff]
      %v397 = vld [vmem:[%s142 + $0x7b8] sm:$0xff]
      %v398 = vld [vmem:[%s142 + $0x7c0] sm:$0xf]
      %v399 = vld [vmem:[%s142 + $0x7c8] sm:$0xf]
      %v400 = vld [vmem:[%s142 + $0x7d0] sm:$0xff]
      %v401 = vld [vmem:[%s142 + $0x7d8] sm:$0xff]
      %v402 = vld [vmem:[%s142 + $0x7e0] sm:$0xff]
      %v403 = vld [vmem:[%s142 + $0x7e8] sm:$0xff]
      %v404 = vld [vmem:[%s142 + $0x7f0] sm:$0xff]
      %v405 = vld [vmem:[%s142 + $0x7f8] sm:$0xff]
      %v406 = vld [vmem:[%s142 + $0x800] sm:$0xff]
      %v407 = vld [vmem:[%s142 + $0x808] sm:$0xff]
      %v408 = vld [vmem:[%s142 + $0x810] sm:$0xf]
      %v409 = vld [vmem:[%s142 + $0x818] sm:$0xf]
      %v410 = vld [vmem:[%s142 + $0x820] sm:$0xff]
      %v411 = vld [vmem:[%s142 + $0x828] sm:$0xff]
      %v412 = vld [vmem:[%s142 + $0x830] sm:$0xff]
      %v413 = vld [vmem:[%s142 + $0x838] sm:$0xff]
      %v414 = vld [vmem:[%s142 + $0x840] sm:$0xff]
      %v415 = vld [vmem:[%s142 + $0x848] sm:$0xff]
      %v416 = vld [vmem:[%s142 + $0x850] sm:$0xff]
      %v417 = vld [vmem:[%s142 + $0x858] sm:$0xff]
      %v418 = vld [vmem:[%s142 + $0x860] sm:$0xf]
      %v419 = vld [vmem:[%s142 + $0x868] sm:$0xf]
      %v420 = vld [vmem:[%s142 + $0x870] sm:$0xff]
      %v421 = vld [vmem:[%s142 + $0x878] sm:$0xff]
      %v422 = vld [vmem:[%s142 + $0x880] sm:$0xff]
      %v423 = vld [vmem:[%s142 + $0x888] sm:$0xff]
      %v424 = vld [vmem:[%s142 + $0x890] sm:$0xff]
      %v425 = vld [vmem:[%s142 + $0x898] sm:$0xff]
      %v426 = vld [vmem:[%s142 + $0x8a0] sm:$0xff]
      %v427 = vld [vmem:[%s142 + $0x8a8] sm:$0xff]
      %v428 = vld [vmem:[%s142 + $0x8b0] sm:$0xf]
      %v429 = vld [vmem:[%s142 + $0x8b8] sm:$0xf]
      %v430 = vld [vmem:[%s142 + $0x8c0] sm:$0xff]
      %v431 = vld [vmem:[%s142 + $0x8c8] sm:$0xff]
      %v432 = vld [vmem:[%s142 + $0x8d0] sm:$0xff]
      %v433 = vld [vmem:[%s142 + $0x8d8] sm:$0xff]
      %v434 = vld [vmem:[%s142 + $0x8e0] sm:$0xff]
      %v435 = vld [vmem:[%s142 + $0x8e8] sm:$0xff]
      %v436 = vld [vmem:[%s142 + $0x8f0] sm:$0xff]
      %v437 = vld [vmem:[%s142 + $0x8f8] sm:$0xff]
      %v438 = vld [vmem:[%s142 + $0x900] sm:$0xf]
      %v439 = vld [vmem:[%s142 + $0x908] sm:$0xf]
      %v440 = vld [vmem:[%s142 + $0x910] sm:$0xff]
      %v441 = vld [vmem:[%s142 + $0x918] sm:$0xff]
      %v442 = vld [vmem:[%s142 + $0x920] sm:$0xff]
      %v443 = vld [vmem:[%s142 + $0x928] sm:$0xff]
      %v444 = vld [vmem:[%s142 + $0x930] sm:$0xff]
      %v445 = vld [vmem:[%s142 + $0x938] sm:$0xff]
      %v446 = vld [vmem:[%s142 + $0x940] sm:$0xff]
      %v447 = vld [vmem:[%s142 + $0x948] sm:$0xff]
      %v448 = vld [vmem:[%s142 + $0x950] sm:$0xf]
      %v449 = vld [vmem:[%s142 + $0x958] sm:$0xf]
      %v450 = vld [vmem:[%s142 + $0x960] sm:$0xff]
      %v451 = vld [vmem:[%s142 + $0x968] sm:$0xff]
      %v452 = vld [vmem:[%s142 + $0x970] sm:$0xff]
      %v453 = vld [vmem:[%s142 + $0x978] sm:$0xff]
      %v454 = vld [vmem:[%s142 + $0x980] sm:$0xff]
      %v455 = vld [vmem:[%s142 + $0x988] sm:$0xff]
      %v456 = vld [vmem:[%s142 + $0x990] sm:$0xff]
      %v457 = vld [vmem:[%s142 + $0x998] sm:$0xff]
      %v458 = vld [vmem:[%s142 + $0x9a0] sm:$0xf]
      %v459 = vld [vmem:[%s142 + $0x9a8] sm:$0xf]
      %v460 = vld [vmem:[%s142 + $0x9b0] sm:$0xff]
      %v461 = vld [vmem:[%s142 + $0x9b8] sm:$0xff]
      %v462 = vld [vmem:[%s142 + $0x9c0] sm:$0xff]
      %v463 = vld [vmem:[%s142 + $0x9c8] sm:$0xff]
      %v464 = vld [vmem:[%s142 + $0x9d0] sm:$0xff]
      %v465 = vld [vmem:[%s142 + $0x9d8] sm:$0xff]
      %v466 = vld [vmem:[%s142 + $0x9e0] sm:$0xff]
      %v467 = vld [vmem:[%s142 + $0x9e8] sm:$0xff]
      %v468 = vld [vmem:[%s142 + $0x9f0] sm:$0xf]
      %v469 = vld [vmem:[%s142 + $0x9f8] sm:$0xf]
      %v470 = vld [vmem:[%s142 + $0xa00] sm:$0xff]
      %v471 = vld [vmem:[%s142 + $0xa08] sm:$0xff]
      %v472 = vld [vmem:[%s142 + $0xa10] sm:$0xff]
      %v473 = vld [vmem:[%s142 + $0xa18] sm:$0xff]
      %v474 = vld [vmem:[%s142 + $0xa20] sm:$0xff]
      %v475 = vld [vmem:[%s142 + $0xa28] sm:$0xff]
      %v476 = vld [vmem:[%s142 + $0xa30] sm:$0xff]
      %v477 = vld [vmem:[%s142 + $0xa38] sm:$0xff]
      %v478 = vld [vmem:[%s142 + $0xa40] sm:$0xf]
      %v479 = vld [vmem:[%s142 + $0xa48] sm:$0xf]
      %v480 = vld [vmem:[%s142 + $0xa50] sm:$0xff]
      %v481 = vld [vmem:[%s142 + $0xa58] sm:$0xff]
      %v482 = vld [vmem:[%s142 + $0xa60] sm:$0xff]
      %v483 = vld [vmem:[%s142 + $0xa68] sm:$0xff]
      %v484 = vld [vmem:[%s142 + $0xa70] sm:$0xff]
      %v485 = vld [vmem:[%s142 + $0xa78] sm:$0xff]
      %v486 = vld [vmem:[%s142 + $0xa80] sm:$0xff]
      %v487 = vld [vmem:[%s142 + $0xa88] sm:$0xff]
      %v488 = vld [vmem:[%s142 + $0xa90] sm:$0xf]
      %v489 = vld [vmem:[%s142 + $0xa98] sm:$0xf]
      %v490 = vld [vmem:[%s142 + $0xaa0] sm:$0xff]
      %v491 = vld [vmem:[%s142 + $0xaa8] sm:$0xff]
      %v492 = vld [vmem:[%s142 + $0xab0] sm:$0xff]
      %v493 = vld [vmem:[%s142 + $0xab8] sm:$0xff]
      %v494 = vld [vmem:[%s142 + $0xac0] sm:$0xff]
      %v495 = vld [vmem:[%s142 + $0xac8] sm:$0xff]
      %v496 = vld [vmem:[%s142 + $0xad0] sm:$0xff]
      %v497 = vld [vmem:[%s142 + $0xad8] sm:$0xff]
      %v498 = vld [vmem:[%s142 + $0xae0] sm:$0xf]
      %v499 = vld [vmem:[%s142 + $0xae8] sm:$0xf]
      %v500 = vld [vmem:[%s142 + $0xaf0] sm:$0xff]
      %v501 = vld [vmem:[%s142 + $0xaf8] sm:$0xff]
      %v502 = vld [vmem:[%s142 + $0xb00] sm:$0xff]
      %v503 = vld [vmem:[%s142 + $0xb08] sm:$0xff]
      %v504 = vld [vmem:[%s142 + $0xb10] sm:$0xff]
      %v505 = vld [vmem:[%s142 + $0xb18] sm:$0xff]
      %v506 = vld [vmem:[%s142 + $0xb20] sm:$0xff]
      %v507 = vld [vmem:[%s142 + $0xb28] sm:$0xff]
      %v508 = vld [vmem:[%s142 + $0xb30] sm:$0xf]
      %v509 = vld [vmem:[%s142 + $0xb38] sm:$0xf]
      %v510 = vld [vmem:[%s142 + $0xb40] sm:$0xff]
      %v511 = vld [vmem:[%s142 + $0xb48] sm:$0xff]
      %v512 = vld [vmem:[%s142 + $0xb50] sm:$0xff]
      %v513 = vld [vmem:[%s142 + $0xb58] sm:$0xff]
      %v514 = vld [vmem:[%s142 + $0xb60] sm:$0xff]
      %v515 = vld [vmem:[%s142 + $0xb68] sm:$0xff]
      %v516 = vld [vmem:[%s142 + $0xb70] sm:$0xff]
      %v517 = vld [vmem:[%s142 + $0xb78] sm:$0xff]
      %v518 = vld [vmem:[%s142 + $0xb80] sm:$0xf]
      %v519 = vld [vmem:[%s142 + $0xb88] sm:$0xf]
      %v520 = vld [vmem:[%s142 + $0xb90] sm:$0xff]
      %v521 = vld [vmem:[%s142 + $0xb98] sm:$0xff]
      %v522 = vld [vmem:[%s142 + $0xba0] sm:$0xff]
      %v523 = vld [vmem:[%s142 + $0xba8] sm:$0xff]
      %v524 = vld [vmem:[%s142 + $0xbb0] sm:$0xff]
      %v525 = vld [vmem:[%s142 + $0xbb8] sm:$0xff]
      %v526 = vld [vmem:[%s142 + $0xbc0] sm:$0xff]
      %v527 = vld [vmem:[%s142 + $0xbc8] sm:$0xff]
      %v528 = vld [vmem:[%s142 + $0xbd0] sm:$0xf]
      %v529 = vld [vmem:[%s142 + $0xbd8] sm:$0xf]
      %v530 = vld [vmem:[%s142 + $0xbe0] sm:$0xff]
      %v531 = vld [vmem:[%s142 + $0xbe8] sm:$0xff]
      %v532 = vld [vmem:[%s142 + $0xbf0] sm:$0xff]
      %v533 = vld [vmem:[%s142 + $0xbf8] sm:$0xff]
      %v534 = vld [vmem:[%s142 + $0xc00] sm:$0xff]
      %v535 = vld [vmem:[%s142 + $0xc08] sm:$0xff]
      %v536 = vld [vmem:[%s142 + $0xc10] sm:$0xff]
      %v537 = vld [vmem:[%s142 + $0xc18] sm:$0xff]
      %v538 = vld [vmem:[%s142 + $0xc20] sm:$0xf]
      %v539 = vld [vmem:[%s142 + $0xc28] sm:$0xf]
      %v540 = vld [vmem:[%s142 + $0xc30] sm:$0xff]
      %v541 = vld [vmem:[%s142 + $0xc38] sm:$0xff]
      %v542 = vld [vmem:[%s142 + $0xc40] sm:$0xff]
      %v543 = vld [vmem:[%s142 + $0xc48] sm:$0xff]
      %v544 = vld [vmem:[%s142 + $0xc50] sm:$0xff]
      %v545 = vld [vmem:[%s142 + $0xc58] sm:$0xff]
      %v546 = vld [vmem:[%s142 + $0xc60] sm:$0xff]
      %v547 = vld [vmem:[%s142 + $0xc68] sm:$0xff]
      %v548 = vld [vmem:[%s142 + $0xc70] sm:$0xf]
      %v549 = vld [vmem:[%s142 + $0xc78] sm:$0xf]
      %v550 = vld [vmem:[%s142 + $0xc80] sm:$0xff]
      %v551 = vld [vmem:[%s142 + $0xc88] sm:$0xff]
      %v552 = vld [vmem:[%s142 + $0xc90] sm:$0xff]
      %v553 = vld [vmem:[%s142 + $0xc98] sm:$0xff]
      %v554 = vld [vmem:[%s142 + $0xca0] sm:$0xff]
      %v555 = vld [vmem:[%s142 + $0xca8] sm:$0xff]
      %v556 = vld [vmem:[%s142 + $0xcb0] sm:$0xff]
      %v557 = vld [vmem:[%s142 + $0xcb8] sm:$0xff]
      %v558 = vld [vmem:[%s142 + $0xcc0] sm:$0xf]
      %v559 = vld [vmem:[%s142 + $0xcc8] sm:$0xf]
      %v560 = vld [vmem:[%s142 + $0xcd0] sm:$0xff]
      %v561 = vld [vmem:[%s142 + $0xcd8] sm:$0xff]
      %v562 = vld [vmem:[%s142 + $0xce0] sm:$0xff]
      %v563 = vld [vmem:[%s142 + $0xce8] sm:$0xff]
      %v564 = vld [vmem:[%s142 + $0xcf0] sm:$0xff]
      %v565 = vld [vmem:[%s142 + $0xcf8] sm:$0xff]
      %v566 = vld [vmem:[%s142 + $0xd00] sm:$0xff]
      %v567 = vld [vmem:[%s142 + $0xd08] sm:$0xff]
      %v568 = vld [vmem:[%s142 + $0xd10] sm:$0xf]
      %v569 = vld [vmem:[%s142 + $0xd18] sm:$0xf]
      %v570 = vld [vmem:[%s142 + $0xd20] sm:$0xff]
      %v571 = vld [vmem:[%s142 + $0xd28] sm:$0xff]
      %v572 = vld [vmem:[%s142 + $0xd30] sm:$0xff]
      %v573 = vld [vmem:[%s142 + $0xd38] sm:$0xff]
      %v574 = vld [vmem:[%s142 + $0xd40] sm:$0xff]
      %v575 = vld [vmem:[%s142 + $0xd48] sm:$0xff]
      %v576 = vld [vmem:[%s142 + $0xd50] sm:$0xff]
      %v577 = vld [vmem:[%s142 + $0xd58] sm:$0xff]
      %v578 = vld [vmem:[%s142 + $0xd60] sm:$0xf]
      %v579 = vld [vmem:[%s142 + $0xd68] sm:$0xf]
      %v580 = vld [vmem:[%s142 + $0xd70] sm:$0xff]
      %v581 = vld [vmem:[%s142 + $0xd78] sm:$0xff]
      %v582 = vld [vmem:[%s142 + $0xd80] sm:$0xff]
      %v583 = vld [vmem:[%s142 + $0xd88] sm:$0xff]
      %v584 = vld [vmem:[%s142 + $0xd90] sm:$0xff]
      %v585 = vld [vmem:[%s142 + $0xd98] sm:$0xff]
      %v586 = vld [vmem:[%s142 + $0xda0] sm:$0xff]
      %v587 = vld [vmem:[%s142 + $0xda8] sm:$0xff]
      %v588 = vld [vmem:[%s142 + $0xdb0] sm:$0xf]
      %v589 = vld [vmem:[%s142 + $0xdb8] sm:$0xf]
      %v590 = vld [vmem:[%s142 + $0xdc0] sm:$0xff]
      %v591 = vld [vmem:[%s142 + $0xdc8] sm:$0xff]
      %v592 = vld [vmem:[%s142 + $0xdd0] sm:$0xff]
      %v593 = vld [vmem:[%s142 + $0xdd8] sm:$0xff]
      %v594 = vld [vmem:[%s142 + $0xde0] sm:$0xff]
      %v595 = vld [vmem:[%s142 + $0xde8] sm:$0xff]
      %v596 = vld [vmem:[%s142 + $0xdf0] sm:$0xff]
      %v597 = vld [vmem:[%s142 + $0xdf8] sm:$0xff]
      %v598 = vld [vmem:[%s142 + $0xe00] sm:$0xf]
      %v599 = vld [vmem:[%s142 + $0xe08] sm:$0xf]
      %v600 = vld [vmem:[%s142 + $0xe10] sm:$0xff]
      %v601 = vld [vmem:[%s142 + $0xe18] sm:$0xff]
      %v602 = vld [vmem:[%s142 + $0xe20] sm:$0xff]
      %v603 = vld [vmem:[%s142 + $0xe28] sm:$0xff]
      %v604 = vld [vmem:[%s142 + $0xe30] sm:$0xff]
      %v605 = vld [vmem:[%s142 + $0xe38] sm:$0xff]
      %v606 = vld [vmem:[%s142 + $0xe40] sm:$0xff]
      %v607 = vld [vmem:[%s142 + $0xe48] sm:$0xff]
      %v608 = vld [vmem:[%s142 + $0xe50] sm:$0xf]
      %v609 = vld [vmem:[%s142 + $0xe58] sm:$0xf]
      %v610 = vld [vmem:[%s142 + $0xe60] sm:$0xff]
      %v611 = vld [vmem:[%s142 + $0xe68] sm:$0xff]
      %v612 = vld [vmem:[%s142 + $0xe70] sm:$0xff]
      %v613 = vld [vmem:[%s142 + $0xe78] sm:$0xff]
      %v614 = vld [vmem:[%s142 + $0xe80] sm:$0xff]
      %v615 = vld [vmem:[%s142 + $0xe88] sm:$0xff]
      %v616 = vld [vmem:[%s142 + $0xe90] sm:$0xff]
      %v617 = vld [vmem:[%s142 + $0xe98] sm:$0xff]
      %v618 = vld [vmem:[%s142 + $0xea0] sm:$0xf]
      %v619 = vld [vmem:[%s142 + $0xea8] sm:$0xf]
      %v620 = vld [vmem:[%s142 + $0xeb0] sm:$0xff]
      %v621 = vld [vmem:[%s142 + $0xeb8] sm:$0xff]
      %v622 = vld [vmem:[%s142 + $0xec0] sm:$0xff]
      %v623 = vld [vmem:[%s142 + $0xec8] sm:$0xff]
      %v624 = vld [vmem:[%s142 + $0xed0] sm:$0xff]
      %v625 = vld [vmem:[%s142 + $0xed8] sm:$0xff]
      %v626 = vld [vmem:[%s142 + $0xee0] sm:$0xff]
      %v627 = vld [vmem:[%s142 + $0xee8] sm:$0xff]
      %v628 = vld [vmem:[%s142 + $0xef0] sm:$0xf]
      %v629 = vld [vmem:[%s142 + $0xef8] sm:$0xf]
      %v630 = vld [vmem:[%s142 + $0xf00] sm:$0xff]
      %v631 = vld [vmem:[%s142 + $0xf08] sm:$0xff]
      %v632 = vld [vmem:[%s142 + $0xf10] sm:$0xff]
      %v633 = vld [vmem:[%s142 + $0xf18] sm:$0xff]
      %v634 = vld [vmem:[%s142 + $0xf20] sm:$0xff]
      %v635 = vld [vmem:[%s142 + $0xf28] sm:$0xff]
      %v636 = vld [vmem:[%s142 + $0xf30] sm:$0xff]
      %v637 = vld [vmem:[%s142 + $0xf38] sm:$0xff]
      %v638 = vld [vmem:[%s142 + $0xf40] sm:$0xf]
      %v639 = vld [vmem:[%s142 + $0xf48] sm:$0xf]
      %v640 = vld [vmem:[%s142 + $0xf50] sm:$0xff]
      %v641 = vld [vmem:[%s142 + $0xf58] sm:$0xff]
      %v642 = vld [vmem:[%s142 + $0xf60] sm:$0xff]
      %v643 = vld [vmem:[%s142 + $0xf68] sm:$0xff]
      %v644 = vld [vmem:[%s142 + $0xf70] sm:$0xff]
      %v645 = vld [vmem:[%s142 + $0xf78] sm:$0xff]
      %v646 = vld [vmem:[%s142 + $0xf80] sm:$0xff]
      %v647 = vld [vmem:[%s142 + $0xf88] sm:$0xff]
      %v648 = vld [vmem:[%s142 + $0xf90] sm:$0xf]
      %v649 = vld [vmem:[%s142 + $0xf98] sm:$0xf]
      %v650 = vld [vmem:[%s142 + $0xfa0] sm:$0xff]
      %v651 = vld [vmem:[%s142 + $0xfa8] sm:$0xff]
      %v652 = vld [vmem:[%s142 + $0xfb0] sm:$0xff]
      %v653 = vld [vmem:[%s142 + $0xfb8] sm:$0xff]
      %v654 = vld [vmem:[%s142 + $0xfc0] sm:$0xff]
      %v655 = vld [vmem:[%s142 + $0xfc8] sm:$0xff]
      %v656 = vld [vmem:[%s142 + $0xfd0] sm:$0xff]
      %v657 = vld [vmem:[%s142 + $0xfd8] sm:$0xff]
      %v658 = vld [vmem:[%s142 + $0xfe0] sm:$0xf]
      %v659 = vld [vmem:[%s142 + $0xfe8] sm:$0xf]
      %v660 = vld [vmem:[%s142 + $0xff0] sm:$0xff]
      %v661 = vld [vmem:[%s142 + $0xff8] sm:$0xff]
      %v662 = vld [vmem:[%s142 + $0x1000] sm:$0xff]
      %v663 = vld [vmem:[%s142 + $0x1008] sm:$0xff]
      %v664 = vld [vmem:[%s142 + $0x1010] sm:$0xff]
      %v665 = vld [vmem:[%s142 + $0x1018] sm:$0xff]
      %v666 = vld [vmem:[%s142 + $0x1020] sm:$0xff]
      %v667 = vld [vmem:[%s142 + $0x1028] sm:$0xff]
      %v668 = vld [vmem:[%s142 + $0x1030] sm:$0xf]
      %v669 = vld [vmem:[%s142 + $0x1038] sm:$0xf]
      %v670 = vld [vmem:[%s142 + $0x1040] sm:$0xff]
      %v671 = vld [vmem:[%s142 + $0x1048] sm:$0xff]
      %v672 = vld [vmem:[%s142 + $0x1050] sm:$0xff]
      %v673 = vld [vmem:[%s142 + $0x1058] sm:$0xff]
      %v674 = vld [vmem:[%s142 + $0x1060] sm:$0xff]
      %v675 = vld [vmem:[%s142 + $0x1068] sm:$0xff]
      %v676 = vld [vmem:[%s142 + $0x1070] sm:$0xff]
      %v677 = vld [vmem:[%s142 + $0x1078] sm:$0xff]
      %v678 = vld [vmem:[%s142 + $0x1080] sm:$0xf]
      %v679 = vld [vmem:[%s142 + $0x1088] sm:$0xf]
      %v680 = vld [vmem:[%s142 + $0x1090] sm:$0xff]
      %v681 = vld [vmem:[%s142 + $0x1098] sm:$0xff]
      %v682 = vld [vmem:[%s142 + $0x10a0] sm:$0xff]
      %v683 = vld [vmem:[%s142 + $0x10a8] sm:$0xff]
      %v684 = vld [vmem:[%s142 + $0x10b0] sm:$0xff]
      %v685 = vld [vmem:[%s142 + $0x10b8] sm:$0xff]
      %v686 = vld [vmem:[%s142 + $0x10c0] sm:$0xff]
      %v687 = vld [vmem:[%s142 + $0x10c8] sm:$0xff]
      %v688 = vld [vmem:[%s142 + $0x10d0] sm:$0xf]
      %v689 = vld [vmem:[%s142 + $0x10d8] sm:$0xf]
      %v690 = vld [vmem:[%s142 + $0x10e0] sm:$0xff]
      %v691 = vld [vmem:[%s142 + $0x10e8] sm:$0xff]
      %v692 = vld [vmem:[%s142 + $0x10f0] sm:$0xff]
      %v693 = vld [vmem:[%s142 + $0x10f8] sm:$0xff]
      %v694 = vld [vmem:[%s142 + $0x1100] sm:$0xff]
      %v695 = vld [vmem:[%s142 + $0x1108] sm:$0xff]
      %v696 = vld [vmem:[%s142 + $0x1110] sm:$0xff]
      %v697 = vld [vmem:[%s142 + $0x1118] sm:$0xff]
      %v698 = vld [vmem:[%s142 + $0x1120] sm:$0xf]
      %v699 = vld [vmem:[%s142 + $0x1128] sm:$0xf]
      %v700 = vld [vmem:[%s142 + $0x1130] sm:$0xff]
      %v701 = vld [vmem:[%s142 + $0x1138] sm:$0xff]
      %v702 = vld [vmem:[%s142 + $0x1140] sm:$0xff]
      %v703 = vld [vmem:[%s142 + $0x1148] sm:$0xff]
      %v704 = vld [vmem:[%s142 + $0x1150] sm:$0xff]
      %v705 = vld [vmem:[%s142 + $0x1158] sm:$0xff]
      %v706 = vld [vmem:[%s142 + $0x1160] sm:$0xff]
      %v707 = vld [vmem:[%s142 + $0x1168] sm:$0xff]
      %v708 = vld [vmem:[%s142 + $0x1170] sm:$0xf]
      %v709 = vld [vmem:[%s142 + $0x1178] sm:$0xf]
      %v710 = vld [vmem:[%s142 + $0x1180] sm:$0xff]
      %v711 = vld [vmem:[%s142 + $0x1188] sm:$0xff]
      %v712 = vld [vmem:[%s142 + $0x1190] sm:$0xff]
      %v713 = vld [vmem:[%s142 + $0x1198] sm:$0xff]
      %v714 = vld [vmem:[%s142 + $0x11a0] sm:$0xff]
      %v715 = vld [vmem:[%s142 + $0x11a8] sm:$0xff]
      %v716 = vld [vmem:[%s142 + $0x11b0] sm:$0xff]
      %v717 = vld [vmem:[%s142 + $0x11b8] sm:$0xff]
      %v718 = vld [vmem:[%s142 + $0x11c0] sm:$0xf]
      %v719 = vld [vmem:[%s142 + $0x11c8] sm:$0xf]
      %v720 = vld [vmem:[%s142 + $0x11d0] sm:$0xff]
      %v721 = vld [vmem:[%s142 + $0x11d8] sm:$0xff]
      %v722 = vld [vmem:[%s142 + $0x11e0] sm:$0xff]
      %v723 = vld [vmem:[%s142 + $0x11e8] sm:$0xff]
      %v724 = vld [vmem:[%s142 + $0x11f0] sm:$0xff]
      %v725 = vld [vmem:[%s142 + $0x11f8] sm:$0xff]
      %v726 = vld [vmem:[%s142 + $0x1200] sm:$0xff]
      %v727 = vld [vmem:[%s142 + $0x1208] sm:$0xff]
      %v728 = vld [vmem:[%s142 + $0x1210] sm:$0xf]
      %v729 = vld [vmem:[%s142 + $0x1218] sm:$0xf]
      %v730 = vld [vmem:[%s142 + $0x1220] sm:$0xff]
      %v731 = vld [vmem:[%s142 + $0x1228] sm:$0xff]
      %v732 = vld [vmem:[%s142 + $0x1230] sm:$0xff]
      %v733 = vld [vmem:[%s142 + $0x1238] sm:$0xff]
      %v734 = vld [vmem:[%s142 + $0x1240] sm:$0xff]
      %v735 = vld [vmem:[%s142 + $0x1248] sm:$0xff]
      %v736 = vld [vmem:[%s142 + $0x1250] sm:$0xff]
      %v737 = vld [vmem:[%s142 + $0x1258] sm:$0xff]
      %v738 = vld [vmem:[%s142 + $0x1260] sm:$0xf]
      %v739 = vld [vmem:[%s142 + $0x1268] sm:$0xf]
      %v740 = vld [vmem:[%s142 + $0x1270] sm:$0xff]
      %v741 = vld [vmem:[%s142 + $0x1278] sm:$0xff]
      %v742 = vld [vmem:[%s142 + $0x1280] sm:$0xff]
      %v743 = vld [vmem:[%s142 + $0x1288] sm:$0xff]
      %v744 = vld [vmem:[%s142 + $0x1290] sm:$0xff]
      %v745 = vld [vmem:[%s142 + $0x1298] sm:$0xff]
      %v746 = vld [vmem:[%s142 + $0x12a0] sm:$0xff]
      %v747 = vld [vmem:[%s142 + $0x12a8] sm:$0xff]
      %v748 = vld [vmem:[%s142 + $0x12b0] sm:$0xf]
      %v749 = vld [vmem:[%s142 + $0x12b8] sm:$0xf]
      %v750 = vld [vmem:[%s142 + $0x12c0] sm:$0xff]
      %v751 = vld [vmem:[%s142 + $0x12c8] sm:$0xff]
      %v752 = vld [vmem:[%s142 + $0x12d0] sm:$0xff]
      %v753 = vld [vmem:[%s142 + $0x12d8] sm:$0xff]
      %v754 = vld [vmem:[%s142 + $0x12e0] sm:$0xff]
      %v755 = vld [vmem:[%s142 + $0x12e8] sm:$0xff]
      %v756 = vld [vmem:[%s142 + $0x12f0] sm:$0xff]
      %v757 = vld [vmem:[%s142 + $0x12f8] sm:$0xff]
      %v758 = vld [vmem:[%s142 + $0x1300] sm:$0xf]
      %v759 = vld [vmem:[%s142 + $0x1308] sm:$0xf]
      %v760 = vld [vmem:[%s142 + $0x1310] sm:$0xff]
      %v761 = vld [vmem:[%s142 + $0x1318] sm:$0xff]
      %v762 = vld [vmem:[%s142 + $0x1320] sm:$0xff]
      %v763 = vld [vmem:[%s142 + $0x1328] sm:$0xff]
      %v764 = vld [vmem:[%s142 + $0x1330] sm:$0xff]
      %v765 = vld [vmem:[%s142 + $0x1338] sm:$0xff]
      %v766 = vld [vmem:[%s142 + $0x1340] sm:$0xff]
      %v767 = vld [vmem:[%s142 + $0x1348] sm:$0xff]
      %v768 = vld [vmem:[%s142 + $0x1350] sm:$0xf]
      %v769 = vld [vmem:[%s142 + $0x1358] sm:$0xf]
      %v770 = vld [vmem:[%s142 + $0x1360] sm:$0xff]
      %v771 = vld [vmem:[%s142 + $0x1368] sm:$0xff]
      %v772 = vld [vmem:[%s142 + $0x1370] sm:$0xff]
      %v773 = vld [vmem:[%s142 + $0x1378] sm:$0xff]
      %v774 = vld [vmem:[%s142 + $0x1380] sm:$0xff]
      %v775 = vld [vmem:[%s142 + $0x1388] sm:$0xff]
      %v776 = vld [vmem:[%s142 + $0x1390] sm:$0xff]
      %v777 = vld [vmem:[%s142 + $0x1398] sm:$0xff]
      %v778 = vld [vmem:[%s142 + $0x13a0] sm:$0xf]
      %v779 = vld [vmem:[%s142 + $0x13a8] sm:$0xf]
      %v780 = vld [vmem:[%s142 + $0x13b0] sm:$0xff]
      %v781 = vld [vmem:[%s142 + $0x13b8] sm:$0xff]
      %v782 = vld [vmem:[%s142 + $0x13c0] sm:$0xff]
      %v783 = vld [vmem:[%s142 + $0x13c8] sm:$0xff]
      %v784 = vld [vmem:[%s142 + $0x13d0] sm:$0xff]
      %v785 = vld [vmem:[%s142 + $0x13d8] sm:$0xff]
      %v786 = vld [vmem:[%s142 + $0x13e0] sm:$0xff]
      %v787 = vld [vmem:[%s142 + $0x13e8] sm:$0xff]
      %v788 = vld [vmem:[%s142 + $0x13f0] sm:$0xf]
      %v789 = vld [vmem:[%s142 + $0x13f8] sm:$0xf]
      %v790 = vadd.f32 %v150, %v152
      %v791 = vadd.f32 %v790, %v154
      %v792 = vadd.f32 %v791, %v156
      %vm793 = vcmask 1043456
      %v794 = vsel %vm793, %v158, 0.0
      %v795 = vadd.f32 %v792, %v794
      %v796 = vrot.slane %v795, 4
      %v797 = vadd.f32 %v795, %v796
      %v798 = vrot.slane %v797, 2
      %v799 = vadd.f32 %v797, %v798
      %v800 = vrot.slane %v799, 1
      %v801 = vadd.f32 %v799, %v800
      %vm802 = vcmask 130048
      %v803 = vsel %vm802, %v151, 0.0
      %v804 = vsel %vm802, %v153, 0.0
      %v805 = vadd.f32 %v803, %v804
      %v806 = vsel %vm802, %v155, 0.0
      %v807 = vadd.f32 %v805, %v806
      %v808 = vsel %vm802, %v157, 0.0
      %v809 = vadd.f32 %v807, %v808
      %vm810 = vcmask 125952
      %v811 = vsel %vm810, %v159, 0.0
      %v812 = vadd.f32 %v809, %v811
      %v813 = vrot.slane %v812, 4
      %v814 = vadd.f32 %v812, %v813
      %v815 = vrot.slane %v814, 2
      %v816 = vadd.f32 %v814, %v815
      %v817 = vrot.slane %v816, 1
      %v818 = vadd.f32 %v816, %v817
      %v819 = vadd.f32 %v160, %v162
      %v820 = vadd.f32 %v819, %v164
      %v821 = vadd.f32 %v820, %v166
      %v822 = vsel %vm793, %v168, 0.0
      %v823 = vadd.f32 %v821, %v822
      %v824 = vrot.slane %v823, 4
      %v825 = vadd.f32 %v823, %v824
      %v826 = vrot.slane %v825, 2
      %v827 = vadd.f32 %v825, %v826
      %v828 = vrot.slane %v827, 1
      %v829 = vadd.f32 %v827, %v828
      %v830 = vsel %vm802, %v161, 0.0
      %v831 = vsel %vm802, %v163, 0.0
      %v832 = vadd.f32 %v830, %v831
      %v833 = vsel %vm802, %v165, 0.0
      %v834 = vadd.f32 %v832, %v833
      %v835 = vsel %vm802, %v167, 0.0
      %v836 = vadd.f32 %v834, %v835
      %v837 = vsel %vm810, %v169, 0.0
      %v838 = vadd.f32 %v836, %v837
      %v839 = vrot.slane %v838, 4
      %v840 = vadd.f32 %v838, %v839
      %v841 = vrot.slane %v840, 2
      %v842 = vadd.f32 %v840, %v841
      %v843 = vrot.slane %v842, 1
      %v844 = vadd.f32 %v842, %v843
      %v845 = vadd.f32 %v170, %v172
      %v846 = vadd.f32 %v845, %v174
      %v847 = vadd.f32 %v846, %v176
      %v848 = vsel %vm793, %v178, 0.0
      %v849 = vadd.f32 %v847, %v848
      %v850 = vrot.slane %v849, 4
      %v851 = vadd.f32 %v849, %v850
      %v852 = vrot.slane %v851, 2
      %v853 = vadd.f32 %v851, %v852
      %v854 = vrot.slane %v853, 1
      %v855 = vadd.f32 %v853, %v854
      %v856 = vsel %vm802, %v171, 0.0
      %v857 = vsel %vm802, %v173, 0.0
      %v858 = vadd.f32 %v856, %v857
      %v859 = vsel %vm802, %v175, 0.0
      %v860 = vadd.f32 %v858, %v859
      %v861 = vsel %vm802, %v177, 0.0
      %v862 = vadd.f32 %v860, %v861
      %v863 = vsel %vm810, %v179, 0.0
      %v864 = vadd.f32 %v862, %v863
      %v865 = vrot.slane %v864, 4
      %v866 = vadd.f32 %v864, %v865
      %v867 = vrot.slane %v866, 2
      %v868 = vadd.f32 %v866, %v867
      %v869 = vrot.slane %v868, 1
      %v870 = vadd.f32 %v868, %v869
      %v871 = vadd.f32 %v180, %v182
      %v872 = vadd.f32 %v871, %v184
      %v873 = vadd.f32 %v872, %v186
      %v874 = vsel %vm793, %v188, 0.0
      %v875 = vadd.f32 %v873, %v874
      %v876 = vrot.slane %v875, 4
      %v877 = vadd.f32 %v875, %v876
      %v878 = vrot.slane %v877, 2
      %v879 = vadd.f32 %v877, %v878
      %v880 = vrot.slane %v879, 1
      %v881 = vadd.f32 %v879, %v880
      %v882 = vsel %vm802, %v181, 0.0
      %v883 = vsel %vm802, %v183, 0.0
      %v884 = vadd.f32 %v882, %v883
      %v885 = vsel %vm802, %v185, 0.0
      %v886 = vadd.f32 %v884, %v885
      %v887 = vsel %vm802, %v187, 0.0
      %v888 = vadd.f32 %v886, %v887
      %v889 = vsel %vm810, %v189, 0.0
      %v890 = vadd.f32 %v888, %v889
      %v891 = vrot.slane %v890, 4
      %v892 = vadd.f32 %v890, %v891
      %v893 = vrot.slane %v892, 2
      %v894 = vadd.f32 %v892, %v893
      %v895 = vrot.slane %v894, 1
      %v896 = vadd.f32 %v894, %v895
      %v897 = vadd.f32 %v190, %v192
      %v898 = vadd.f32 %v897, %v194
      %v899 = vadd.f32 %v898, %v196
      %v900 = vsel %vm793, %v198, 0.0
      %v901 = vadd.f32 %v899, %v900
      %v902 = vrot.slane %v901, 4
      %v903 = vadd.f32 %v901, %v902
      %v904 = vrot.slane %v903, 2
      %v905 = vadd.f32 %v903, %v904
      %v906 = vrot.slane %v905, 1
      %v907 = vadd.f32 %v905, %v906
      %v908 = vsel %vm802, %v191, 0.0
      %v909 = vsel %vm802, %v193, 0.0
      %v910 = vadd.f32 %v908, %v909
      %v911 = vsel %vm802, %v195, 0.0
      %v912 = vadd.f32 %v910, %v911
      %v913 = vsel %vm802, %v197, 0.0
      %v914 = vadd.f32 %v912, %v913
      %v915 = vsel %vm810, %v199, 0.0
      %v916 = vadd.f32 %v914, %v915
      %v917 = vrot.slane %v916, 4
      %v918 = vadd.f32 %v916, %v917
      %v919 = vrot.slane %v918, 2
      %v920 = vadd.f32 %v918, %v919
      %v921 = vrot.slane %v920, 1
      %v922 = vadd.f32 %v920, %v921
      %v923 = vadd.f32 %v200, %v202
      %v924 = vadd.f32 %v923, %v204
      %v925 = vadd.f32 %v924, %v206
      %v926 = vsel %vm793, %v208, 0.0
      %v927 = vadd.f32 %v925, %v926
      %v928 = vrot.slane %v927, 4
      %v929 = vadd.f32 %v927, %v928
      %v930 = vrot.slane %v929, 2
      %v931 = vadd.f32 %v929, %v930
      %v932 = vrot.slane %v931, 1
      %v933 = vadd.f32 %v931, %v932
      %v934 = vsel %vm802, %v201, 0.0
      %v935 = vsel %vm802, %v203, 0.0
      %v936 = vadd.f32 %v934, %v935
      %v937 = vsel %vm802, %v205, 0.0
      %v938 = vadd.f32 %v936, %v937
      %v939 = vsel %vm802, %v207, 0.0
      %v940 = vadd.f32 %v938, %v939
      %v941 = vsel %vm810, %v209, 0.0
      %v942 = vadd.f32 %v940, %v941
      %v943 = vrot.slane %v942, 4
      %v944 = vadd.f32 %v942, %v943
      %v945 = vrot.slane %v944, 2
      %v946 = vadd.f32 %v944, %v945
      %v947 = vrot.slane %v946, 1
      %v948 = vadd.f32 %v946, %v947
      %v949 = vadd.f32 %v210, %v212
      %v950 = vadd.f32 %v949, %v214
      %v951 = vadd.f32 %v950, %v216
      %v952 = vsel %vm793, %v218, 0.0
      %v953 = vadd.f32 %v951, %v952
      %v954 = vrot.slane %v953, 4
      %v955 = vadd.f32 %v953, %v954
      %v956 = vrot.slane %v955, 2
      %v957 = vadd.f32 %v955, %v956
      %v958 = vrot.slane %v957, 1
      %v959 = vadd.f32 %v957, %v958
      %v960 = vsel %vm802, %v211, 0.0
      %v961 = vsel %vm802, %v213, 0.0
      %v962 = vadd.f32 %v960, %v961
      %v963 = vsel %vm802, %v215, 0.0
      %v964 = vadd.f32 %v962, %v963
      %v965 = vsel %vm802, %v217, 0.0
      %v966 = vadd.f32 %v964, %v965
      %v967 = vsel %vm810, %v219, 0.0
      %v968 = vadd.f32 %v966, %v967
      %v969 = vrot.slane %v968, 4
      %v970 = vadd.f32 %v968, %v969
      %v971 = vrot.slane %v970, 2
      %v972 = vadd.f32 %v970, %v971
      %v973 = vrot.slane %v972, 1
      %v974 = vadd.f32 %v972, %v973
      %v975 = vadd.f32 %v220, %v222
      %v976 = vadd.f32 %v975, %v224
      %v977 = vadd.f32 %v976, %v226
      %v978 = vsel %vm793, %v228, 0.0
      %v979 = vadd.f32 %v977, %v978
      %v980 = vrot.slane %v979, 4
      %v981 = vadd.f32 %v979, %v980
      %v982 = vrot.slane %v981, 2
      %v983 = vadd.f32 %v981, %v982
      %v984 = vrot.slane %v983, 1
      %v985 = vadd.f32 %v983, %v984
      %v986 = vsel %vm802, %v221, 0.0
      %v987 = vsel %vm802, %v223, 0.0
      %v988 = vadd.f32 %v986, %v987
      %v989 = vsel %vm802, %v225, 0.0
      %v990 = vadd.f32 %v988, %v989
      %v991 = vsel %vm802, %v227, 0.0
      %v992 = vadd.f32 %v990, %v991
      %v993 = vsel %vm810, %v229, 0.0
      %v994 = vadd.f32 %v992, %v993
      %v995 = vrot.slane %v994, 4
      %v996 = vadd.f32 %v994, %v995
      %v997 = vrot.slane %v996, 2
      %v998 = vadd.f32 %v996, %v997
      %v999 = vrot.slane %v998, 1
      %v1000 = vadd.f32 %v998, %v999
      %v1001 = vadd.f32 %v230, %v232
      %v1002 = vadd.f32 %v1001, %v234
      %v1003 = vadd.f32 %v1002, %v236
      %v1004 = vsel %vm793, %v238, 0.0
      %v1005 = vadd.f32 %v1003, %v1004
      %v1006 = vrot.slane %v1005, 4
      %v1007 = vadd.f32 %v1005, %v1006
      %v1008 = vrot.slane %v1007, 2
      %v1009 = vadd.f32 %v1007, %v1008
      %v1010 = vrot.slane %v1009, 1
      %v1011 = vadd.f32 %v1009, %v1010
      %v1012 = vsel %vm802, %v231, 0.0
      %v1013 = vsel %vm802, %v233, 0.0
      %v1014 = vadd.f32 %v1012, %v1013
      %v1015 = vsel %vm802, %v235, 0.0
      %v1016 = vadd.f32 %v1014, %v1015
      %v1017 = vsel %vm802, %v237, 0.0
      %v1018 = vadd.f32 %v1016, %v1017
      %v1019 = vsel %vm810, %v239, 0.0
      %v1020 = vadd.f32 %v1018, %v1019
      %v1021 = vrot.slane %v1020, 4
      %v1022 = vadd.f32 %v1020, %v1021
      %v1023 = vrot.slane %v1022, 2
      %v1024 = vadd.f32 %v1022, %v1023
      %v1025 = vrot.slane %v1024, 1
      %v1026 = vadd.f32 %v1024, %v1025
      %v1027 = vadd.f32 %v240, %v242
      %v1028 = vadd.f32 %v1027, %v244
      %v1029 = vadd.f32 %v1028, %v246
      %v1030 = vsel %vm793, %v248, 0.0
      %v1031 = vadd.f32 %v1029, %v1030
      %v1032 = vrot.slane %v1031, 4
      %v1033 = vadd.f32 %v1031, %v1032
      %v1034 = vrot.slane %v1033, 2
      %v1035 = vadd.f32 %v1033, %v1034
      %v1036 = vrot.slane %v1035, 1
      %v1037 = vadd.f32 %v1035, %v1036
      %v1038 = vsel %vm802, %v241, 0.0
      %v1039 = vsel %vm802, %v243, 0.0
      %v1040 = vadd.f32 %v1038, %v1039
      %v1041 = vsel %vm802, %v245, 0.0
      %v1042 = vadd.f32 %v1040, %v1041
      %v1043 = vsel %vm802, %v247, 0.0
      %v1044 = vadd.f32 %v1042, %v1043
      %v1045 = vsel %vm810, %v249, 0.0
      %v1046 = vadd.f32 %v1044, %v1045
      %v1047 = vrot.slane %v1046, 4
      %v1048 = vadd.f32 %v1046, %v1047
      %v1049 = vrot.slane %v1048, 2
      %v1050 = vadd.f32 %v1048, %v1049
      %v1051 = vrot.slane %v1050, 1
      %v1052 = vadd.f32 %v1050, %v1051
      %v1053 = vadd.f32 %v250, %v252
      %v1054 = vadd.f32 %v1053, %v254
      %v1055 = vadd.f32 %v1054, %v256
      %v1056 = vsel %vm793, %v258, 0.0
      %v1057 = vadd.f32 %v1055, %v1056
      %v1058 = vrot.slane %v1057, 4
      %v1059 = vadd.f32 %v1057, %v1058
      %v1060 = vrot.slane %v1059, 2
      %v1061 = vadd.f32 %v1059, %v1060
      %v1062 = vrot.slane %v1061, 1
      %v1063 = vadd.f32 %v1061, %v1062
      %v1064 = vsel %vm802, %v251, 0.0
      %v1065 = vsel %vm802, %v253, 0.0
      %v1066 = vadd.f32 %v1064, %v1065
      %v1067 = vsel %vm802, %v255, 0.0
      %v1068 = vadd.f32 %v1066, %v1067
      %v1069 = vsel %vm802, %v257, 0.0
      %v1070 = vadd.f32 %v1068, %v1069
      %v1071 = vsel %vm810, %v259, 0.0
      %v1072 = vadd.f32 %v1070, %v1071
      %v1073 = vrot.slane %v1072, 4
      %v1074 = vadd.f32 %v1072, %v1073
      %v1075 = vrot.slane %v1074, 2
      %v1076 = vadd.f32 %v1074, %v1075
      %v1077 = vrot.slane %v1076, 1
      %v1078 = vadd.f32 %v1076, %v1077
      %v1079 = vadd.f32 %v260, %v262
      %v1080 = vadd.f32 %v1079, %v264
      %v1081 = vadd.f32 %v1080, %v266
      %v1082 = vsel %vm793, %v268, 0.0
      %v1083 = vadd.f32 %v1081, %v1082
      %v1084 = vrot.slane %v1083, 4
      %v1085 = vadd.f32 %v1083, %v1084
      %v1086 = vrot.slane %v1085, 2
      %v1087 = vadd.f32 %v1085, %v1086
      %v1088 = vrot.slane %v1087, 1
      %v1089 = vadd.f32 %v1087, %v1088
      %v1090 = vsel %vm802, %v261, 0.0
      %v1091 = vsel %vm802, %v263, 0.0
      %v1092 = vadd.f32 %v1090, %v1091
      %v1093 = vsel %vm802, %v265, 0.0
      %v1094 = vadd.f32 %v1092, %v1093
      %v1095 = vsel %vm802, %v267, 0.0
      %v1096 = vadd.f32 %v1094, %v1095
      %v1097 = vsel %vm810, %v269, 0.0
      %v1098 = vadd.f32 %v1096, %v1097
      %v1099 = vrot.slane %v1098, 4
      %v1100 = vadd.f32 %v1098, %v1099
      %v1101 = vrot.slane %v1100, 2
      %v1102 = vadd.f32 %v1100, %v1101
      %v1103 = vrot.slane %v1102, 1
      %v1104 = vadd.f32 %v1102, %v1103
      %v1105 = vadd.f32 %v270, %v272
      %v1106 = vadd.f32 %v1105, %v274
      %v1107 = vadd.f32 %v1106, %v276
      %v1108 = vsel %vm793, %v278, 0.0
      %v1109 = vadd.f32 %v1107, %v1108
      %v1110 = vrot.slane %v1109, 4
      %v1111 = vadd.f32 %v1109, %v1110
      %v1112 = vrot.slane %v1111, 2
      %v1113 = vadd.f32 %v1111, %v1112
      %v1114 = vrot.slane %v1113, 1
      %v1115 = vadd.f32 %v1113, %v1114
      %v1116 = vsel %vm802, %v271, 0.0
      %v1117 = vsel %vm802, %v273, 0.0
      %v1118 = vadd.f32 %v1116, %v1117
      %v1119 = vsel %vm802, %v275, 0.0
      %v1120 = vadd.f32 %v1118, %v1119
      %v1121 = vsel %vm802, %v277, 0.0
      %v1122 = vadd.f32 %v1120, %v1121
      %v1123 = vsel %vm810, %v279, 0.0
      %v1124 = vadd.f32 %v1122, %v1123
      %v1125 = vrot.slane %v1124, 4
      %v1126 = vadd.f32 %v1124, %v1125
      %v1127 = vrot.slane %v1126, 2
      %v1128 = vadd.f32 %v1126, %v1127
      %v1129 = vrot.slane %v1128, 1
      %v1130 = vadd.f32 %v1128, %v1129
      %v1131 = vadd.f32 %v280, %v282
      %v1132 = vadd.f32 %v1131, %v284
      %v1133 = vadd.f32 %v1132, %v286
      %v1134 = vsel %vm793, %v288, 0.0
      %v1135 = vadd.f32 %v1133, %v1134
      %v1136 = vrot.slane %v1135, 4
      %v1137 = vadd.f32 %v1135, %v1136
      %v1138 = vrot.slane %v1137, 2
      %v1139 = vadd.f32 %v1137, %v1138
      %v1140 = vrot.slane %v1139, 1
      %v1141 = vadd.f32 %v1139, %v1140
      %v1142 = vsel %vm802, %v281, 0.0
      %v1143 = vsel %vm802, %v283, 0.0
      %v1144 = vadd.f32 %v1142, %v1143
      %v1145 = vsel %vm802, %v285, 0.0
      %v1146 = vadd.f32 %v1144, %v1145
      %v1147 = vsel %vm802, %v287, 0.0
      %v1148 = vadd.f32 %v1146, %v1147
      %v1149 = vsel %vm810, %v289, 0.0
      %v1150 = vadd.f32 %v1148, %v1149
      %v1151 = vrot.slane %v1150, 4
      %v1152 = vadd.f32 %v1150, %v1151
      %v1153 = vrot.slane %v1152, 2
      %v1154 = vadd.f32 %v1152, %v1153
      %v1155 = vrot.slane %v1154, 1
      %v1156 = vadd.f32 %v1154, %v1155
      %v1157 = vadd.f32 %v290, %v292
      %v1158 = vadd.f32 %v1157, %v294
      %v1159 = vadd.f32 %v1158, %v296
      %v1160 = vsel %vm793, %v298, 0.0
      %v1161 = vadd.f32 %v1159, %v1160
      %v1162 = vrot.slane %v1161, 4
      %v1163 = vadd.f32 %v1161, %v1162
      %v1164 = vrot.slane %v1163, 2
      %v1165 = vadd.f32 %v1163, %v1164
      %v1166 = vrot.slane %v1165, 1
      %v1167 = vadd.f32 %v1165, %v1166
      %v1168 = vsel %vm802, %v291, 0.0
      %v1169 = vsel %vm802, %v293, 0.0
      %v1170 = vadd.f32 %v1168, %v1169
      %v1171 = vsel %vm802, %v295, 0.0
      %v1172 = vadd.f32 %v1170, %v1171
      %v1173 = vsel %vm802, %v297, 0.0
      %v1174 = vadd.f32 %v1172, %v1173
      %v1175 = vsel %vm810, %v299, 0.0
      %v1176 = vadd.f32 %v1174, %v1175
      %v1177 = vrot.slane %v1176, 4
      %v1178 = vadd.f32 %v1176, %v1177
      %v1179 = vrot.slane %v1178, 2
      %v1180 = vadd.f32 %v1178, %v1179
      %v1181 = vrot.slane %v1180, 1
      %v1182 = vadd.f32 %v1180, %v1181
      %v1183 = vadd.f32 %v300, %v302
      %v1184 = vadd.f32 %v1183, %v304
      %v1185 = vadd.f32 %v1184, %v306
      %v1186 = vsel %vm793, %v308, 0.0
      %v1187 = vadd.f32 %v1185, %v1186
      %v1188 = vrot.slane %v1187, 4
      %v1189 = vadd.f32 %v1187, %v1188
      %v1190 = vrot.slane %v1189, 2
      %v1191 = vadd.f32 %v1189, %v1190
      %v1192 = vrot.slane %v1191, 1
      %v1193 = vadd.f32 %v1191, %v1192
      %v1194 = vsel %vm802, %v301, 0.0
      %v1195 = vsel %vm802, %v303, 0.0
      %v1196 = vadd.f32 %v1194, %v1195
      %v1197 = vsel %vm802, %v305, 0.0
      %v1198 = vadd.f32 %v1196, %v1197
      %v1199 = vsel %vm802, %v307, 0.0
      %v1200 = vadd.f32 %v1198, %v1199
      %v1201 = vsel %vm810, %v309, 0.0
      %v1202 = vadd.f32 %v1200, %v1201
      %v1203 = vrot.slane %v1202, 4
      %v1204 = vadd.f32 %v1202, %v1203
      %v1205 = vrot.slane %v1204, 2
      %v1206 = vadd.f32 %v1204, %v1205
      %v1207 = vrot.slane %v1206, 1
      %v1208 = vadd.f32 %v1206, %v1207
      %v1209 = vadd.f32 %v310, %v312
      %v1210 = vadd.f32 %v1209, %v314
      %v1211 = vadd.f32 %v1210, %v316
      %v1212 = vsel %vm793, %v318, 0.0
      %v1213 = vadd.f32 %v1211, %v1212
      %v1214 = vrot.slane %v1213, 4
      %v1215 = vadd.f32 %v1213, %v1214
      %v1216 = vrot.slane %v1215, 2
      %v1217 = vadd.f32 %v1215, %v1216
      %v1218 = vrot.slane %v1217, 1
      %v1219 = vadd.f32 %v1217, %v1218
      %v1220 = vsel %vm802, %v311, 0.0
      %v1221 = vsel %vm802, %v313, 0.0
      %v1222 = vadd.f32 %v1220, %v1221
      %v1223 = vsel %vm802, %v315, 0.0
      %v1224 = vadd.f32 %v1222, %v1223
      %v1225 = vsel %vm802, %v317, 0.0
      %v1226 = vadd.f32 %v1224, %v1225
      %v1227 = vsel %vm810, %v319, 0.0
      %v1228 = vadd.f32 %v1226, %v1227
      %v1229 = vrot.slane %v1228, 4
      %v1230 = vadd.f32 %v1228, %v1229
      %v1231 = vrot.slane %v1230, 2
      %v1232 = vadd.f32 %v1230, %v1231
      %v1233 = vrot.slane %v1232, 1
      %v1234 = vadd.f32 %v1232, %v1233
      %v1235 = vadd.f32 %v320, %v322
      %v1236 = vadd.f32 %v1235, %v324
      %v1237 = vadd.f32 %v1236, %v326
      %v1238 = vsel %vm793, %v328, 0.0
      %v1239 = vadd.f32 %v1237, %v1238
      %v1240 = vrot.slane %v1239, 4
      %v1241 = vadd.f32 %v1239, %v1240
      %v1242 = vrot.slane %v1241, 2
      %v1243 = vadd.f32 %v1241, %v1242
      %v1244 = vrot.slane %v1243, 1
      %v1245 = vadd.f32 %v1243, %v1244
      %v1246 = vsel %vm802, %v321, 0.0
      %v1247 = vsel %vm802, %v323, 0.0
      %v1248 = vadd.f32 %v1246, %v1247
      %v1249 = vsel %vm802, %v325, 0.0
      %v1250 = vadd.f32 %v1248, %v1249
      %v1251 = vsel %vm802, %v327, 0.0
      %v1252 = vadd.f32 %v1250, %v1251
      %v1253 = vsel %vm810, %v329, 0.0
      %v1254 = vadd.f32 %v1252, %v1253
      %v1255 = vrot.slane %v1254, 4
      %v1256 = vadd.f32 %v1254, %v1255
      %v1257 = vrot.slane %v1256, 2
      %v1258 = vadd.f32 %v1256, %v1257
      %v1259 = vrot.slane %v1258, 1
      %v1260 = vadd.f32 %v1258, %v1259
      %v1261 = vadd.f32 %v330, %v332
      %v1262 = vadd.f32 %v1261, %v334
      %v1263 = vadd.f32 %v1262, %v336
      %v1264 = vsel %vm793, %v338, 0.0
      %v1265 = vadd.f32 %v1263, %v1264
      %v1266 = vrot.slane %v1265, 4
      %v1267 = vadd.f32 %v1265, %v1266
      %v1268 = vrot.slane %v1267, 2
      %v1269 = vadd.f32 %v1267, %v1268
      %v1270 = vrot.slane %v1269, 1
      %v1271 = vadd.f32 %v1269, %v1270
      %v1272 = vsel %vm802, %v331, 0.0
      %v1273 = vsel %vm802, %v333, 0.0
      %v1274 = vadd.f32 %v1272, %v1273
      %v1275 = vsel %vm802, %v335, 0.0
      %v1276 = vadd.f32 %v1274, %v1275
      %v1277 = vsel %vm802, %v337, 0.0
      %v1278 = vadd.f32 %v1276, %v1277
      %v1279 = vsel %vm810, %v339, 0.0
      %v1280 = vadd.f32 %v1278, %v1279
      %v1281 = vrot.slane %v1280, 4
      %v1282 = vadd.f32 %v1280, %v1281
      %v1283 = vrot.slane %v1282, 2
      %v1284 = vadd.f32 %v1282, %v1283
      %v1285 = vrot.slane %v1284, 1
      %v1286 = vadd.f32 %v1284, %v1285
      %v1287 = vadd.f32 %v340, %v342
      %v1288 = vadd.f32 %v1287, %v344
      %v1289 = vadd.f32 %v1288, %v346
      %v1290 = vsel %vm793, %v348, 0.0
      %v1291 = vadd.f32 %v1289, %v1290
      %v1292 = vrot.slane %v1291, 4
      %v1293 = vadd.f32 %v1291, %v1292
      %v1294 = vrot.slane %v1293, 2
      %v1295 = vadd.f32 %v1293, %v1294
      %v1296 = vrot.slane %v1295, 1
      %v1297 = vadd.f32 %v1295, %v1296
      %v1298 = vsel %vm802, %v341, 0.0
      %v1299 = vsel %vm802, %v343, 0.0
      %v1300 = vadd.f32 %v1298, %v1299
      %v1301 = vsel %vm802, %v345, 0.0
      %v1302 = vadd.f32 %v1300, %v1301
      %v1303 = vsel %vm802, %v347, 0.0
      %v1304 = vadd.f32 %v1302, %v1303
      %v1305 = vsel %vm810, %v349, 0.0
      %v1306 = vadd.f32 %v1304, %v1305
      %v1307 = vrot.slane %v1306, 4
      %v1308 = vadd.f32 %v1306, %v1307
      %v1309 = vrot.slane %v1308, 2
      %v1310 = vadd.f32 %v1308, %v1309
      %v1311 = vrot.slane %v1310, 1
      %v1312 = vadd.f32 %v1310, %v1311
      %v1313 = vadd.f32 %v350, %v352
      %v1314 = vadd.f32 %v1313, %v354
      %v1315 = vadd.f32 %v1314, %v356
      %v1316 = vsel %vm793, %v358, 0.0
      %v1317 = vadd.f32 %v1315, %v1316
      %v1318 = vrot.slane %v1317, 4
      %v1319 = vadd.f32 %v1317, %v1318
      %v1320 = vrot.slane %v1319, 2
      %v1321 = vadd.f32 %v1319, %v1320
      %v1322 = vrot.slane %v1321, 1
      %v1323 = vadd.f32 %v1321, %v1322
      %v1324 = vsel %vm802, %v351, 0.0
      %v1325 = vsel %vm802, %v353, 0.0
      %v1326 = vadd.f32 %v1324, %v1325
      %v1327 = vsel %vm802, %v355, 0.0
      %v1328 = vadd.f32 %v1326, %v1327
      %v1329 = vsel %vm802, %v357, 0.0
      %v1330 = vadd.f32 %v1328, %v1329
      %v1331 = vsel %vm810, %v359, 0.0
      %v1332 = vadd.f32 %v1330, %v1331
      %v1333 = vrot.slane %v1332, 4
      %v1334 = vadd.f32 %v1332, %v1333
      %v1335 = vrot.slane %v1334, 2
      %v1336 = vadd.f32 %v1334, %v1335
      %v1337 = vrot.slane %v1336, 1
      %v1338 = vadd.f32 %v1336, %v1337
      %v1339 = vadd.f32 %v360, %v362
      %v1340 = vadd.f32 %v1339, %v364
      %v1341 = vadd.f32 %v1340, %v366
      %v1342 = vsel %vm793, %v368, 0.0
      %v1343 = vadd.f32 %v1341, %v1342
      %v1344 = vrot.slane %v1343, 4
      %v1345 = vadd.f32 %v1343, %v1344
      %v1346 = vrot.slane %v1345, 2
      %v1347 = vadd.f32 %v1345, %v1346
      %v1348 = vrot.slane %v1347, 1
      %v1349 = vadd.f32 %v1347, %v1348
      %v1350 = vsel %vm802, %v361, 0.0
      %v1351 = vsel %vm802, %v363, 0.0
      %v1352 = vadd.f32 %v1350, %v1351
      %v1353 = vsel %vm802, %v365, 0.0
      %v1354 = vadd.f32 %v1352, %v1353
      %v1355 = vsel %vm802, %v367, 0.0
      %v1356 = vadd.f32 %v1354, %v1355
      %v1357 = vsel %vm810, %v369, 0.0
      %v1358 = vadd.f32 %v1356, %v1357
      %v1359 = vrot.slane %v1358, 4
      %v1360 = vadd.f32 %v1358, %v1359
      %v1361 = vrot.slane %v1360, 2
      %v1362 = vadd.f32 %v1360, %v1361
      %v1363 = vrot.slane %v1362, 1
      %v1364 = vadd.f32 %v1362, %v1363
      %v1365 = vadd.f32 %v370, %v372
      %v1366 = vadd.f32 %v1365, %v374
      %v1367 = vadd.f32 %v1366, %v376
      %v1368 = vsel %vm793, %v378, 0.0
      %v1369 = vadd.f32 %v1367, %v1368
      %v1370 = vrot.slane %v1369, 4
      %v1371 = vadd.f32 %v1369, %v1370
      %v1372 = vrot.slane %v1371, 2
      %v1373 = vadd.f32 %v1371, %v1372
      %v1374 = vrot.slane %v1373, 1
      %v1375 = vadd.f32 %v1373, %v1374
      %v1376 = vsel %vm802, %v371, 0.0
      %v1377 = vsel %vm802, %v373, 0.0
      %v1378 = vadd.f32 %v1376, %v1377
      %v1379 = vsel %vm802, %v375, 0.0
      %v1380 = vadd.f32 %v1378, %v1379
      %v1381 = vsel %vm802, %v377, 0.0
      %v1382 = vadd.f32 %v1380, %v1381
      %v1383 = vsel %vm810, %v379, 0.0
      %v1384 = vadd.f32 %v1382, %v1383
      %v1385 = vrot.slane %v1384, 4
      %v1386 = vadd.f32 %v1384, %v1385
      %v1387 = vrot.slane %v1386, 2
      %v1388 = vadd.f32 %v1386, %v1387
      %v1389 = vrot.slane %v1388, 1
      %v1390 = vadd.f32 %v1388, %v1389
      %v1391 = vadd.f32 %v380, %v382
      %v1392 = vadd.f32 %v1391, %v384
      %v1393 = vadd.f32 %v1392, %v386
      %v1394 = vsel %vm793, %v388, 0.0
      %v1395 = vadd.f32 %v1393, %v1394
      %v1396 = vrot.slane %v1395, 4
      %v1397 = vadd.f32 %v1395, %v1396
      %v1398 = vrot.slane %v1397, 2
      %v1399 = vadd.f32 %v1397, %v1398
      %v1400 = vrot.slane %v1399, 1
      %v1401 = vadd.f32 %v1399, %v1400
      %v1402 = vsel %vm802, %v381, 0.0
      %v1403 = vsel %vm802, %v383, 0.0
      %v1404 = vadd.f32 %v1402, %v1403
      %v1405 = vsel %vm802, %v385, 0.0
      %v1406 = vadd.f32 %v1404, %v1405
      %v1407 = vsel %vm802, %v387, 0.0
      %v1408 = vadd.f32 %v1406, %v1407
      %v1409 = vsel %vm810, %v389, 0.0
      %v1410 = vadd.f32 %v1408, %v1409
      %v1411 = vrot.slane %v1410, 4
      %v1412 = vadd.f32 %v1410, %v1411
      %v1413 = vrot.slane %v1412, 2
      %v1414 = vadd.f32 %v1412, %v1413
      %v1415 = vrot.slane %v1414, 1
      %v1416 = vadd.f32 %v1414, %v1415
      %v1417 = vadd.f32 %v390, %v392
      %v1418 = vadd.f32 %v1417, %v394
      %v1419 = vadd.f32 %v1418, %v396
      %v1420 = vsel %vm793, %v398, 0.0
      %v1421 = vadd.f32 %v1419, %v1420
      %v1422 = vrot.slane %v1421, 4
      %v1423 = vadd.f32 %v1421, %v1422
      %v1424 = vrot.slane %v1423, 2
      %v1425 = vadd.f32 %v1423, %v1424
      %v1426 = vrot.slane %v1425, 1
      %v1427 = vadd.f32 %v1425, %v1426
      %v1428 = vsel %vm802, %v391, 0.0
      %v1429 = vsel %vm802, %v393, 0.0
      %v1430 = vadd.f32 %v1428, %v1429
      %v1431 = vsel %vm802, %v395, 0.0
      %v1432 = vadd.f32 %v1430, %v1431
      %v1433 = vsel %vm802, %v397, 0.0
      %v1434 = vadd.f32 %v1432, %v1433
      %v1435 = vsel %vm810, %v399, 0.0
      %v1436 = vadd.f32 %v1434, %v1435
      %v1437 = vrot.slane %v1436, 4
      %v1438 = vadd.f32 %v1436, %v1437
      %v1439 = vrot.slane %v1438, 2
      %v1440 = vadd.f32 %v1438, %v1439
      %v1441 = vrot.slane %v1440, 1
      %v1442 = vadd.f32 %v1440, %v1441
      %v1443 = vadd.f32 %v400, %v402
      %v1444 = vadd.f32 %v1443, %v404
      %v1445 = vadd.f32 %v1444, %v406
      %v1446 = vsel %vm793, %v408, 0.0
      %v1447 = vadd.f32 %v1445, %v1446
      %v1448 = vrot.slane %v1447, 4
      %v1449 = vadd.f32 %v1447, %v1448
      %v1450 = vrot.slane %v1449, 2
      %v1451 = vadd.f32 %v1449, %v1450
      %v1452 = vrot.slane %v1451, 1
      %v1453 = vadd.f32 %v1451, %v1452
      %v1454 = vsel %vm802, %v401, 0.0
      %v1455 = vsel %vm802, %v403, 0.0
      %v1456 = vadd.f32 %v1454, %v1455
      %v1457 = vsel %vm802, %v405, 0.0
      %v1458 = vadd.f32 %v1456, %v1457
      %v1459 = vsel %vm802, %v407, 0.0
      %v1460 = vadd.f32 %v1458, %v1459
      %v1461 = vsel %vm810, %v409, 0.0
      %v1462 = vadd.f32 %v1460, %v1461
      %v1463 = vrot.slane %v1462, 4
      %v1464 = vadd.f32 %v1462, %v1463
      %v1465 = vrot.slane %v1464, 2
      %v1466 = vadd.f32 %v1464, %v1465
      %v1467 = vrot.slane %v1466, 1
      %v1468 = vadd.f32 %v1466, %v1467
      %v1469 = vadd.f32 %v410, %v412
      %v1470 = vadd.f32 %v1469, %v414
      %v1471 = vadd.f32 %v1470, %v416
      %v1472 = vsel %vm793, %v418, 0.0
      %v1473 = vadd.f32 %v1471, %v1472
      %v1474 = vrot.slane %v1473, 4
      %v1475 = vadd.f32 %v1473, %v1474
      %v1476 = vrot.slane %v1475, 2
      %v1477 = vadd.f32 %v1475, %v1476
      %v1478 = vrot.slane %v1477, 1
      %v1479 = vadd.f32 %v1477, %v1478
      %v1480 = vsel %vm802, %v411, 0.0
      %v1481 = vsel %vm802, %v413, 0.0
      %v1482 = vadd.f32 %v1480, %v1481
      %v1483 = vsel %vm802, %v415, 0.0
      %v1484 = vadd.f32 %v1482, %v1483
      %v1485 = vsel %vm802, %v417, 0.0
      %v1486 = vadd.f32 %v1484, %v1485
      %v1487 = vsel %vm810, %v419, 0.0
      %v1488 = vadd.f32 %v1486, %v1487
      %v1489 = vrot.slane %v1488, 4
      %v1490 = vadd.f32 %v1488, %v1489
      %v1491 = vrot.slane %v1490, 2
      %v1492 = vadd.f32 %v1490, %v1491
      %v1493 = vrot.slane %v1492, 1
      %v1494 = vadd.f32 %v1492, %v1493
      %v1495 = vadd.f32 %v420, %v422
      %v1496 = vadd.f32 %v1495, %v424
      %v1497 = vadd.f32 %v1496, %v426
      %v1498 = vsel %vm793, %v428, 0.0
      %v1499 = vadd.f32 %v1497, %v1498
      %v1500 = vrot.slane %v1499, 4
      %v1501 = vadd.f32 %v1499, %v1500
      %v1502 = vrot.slane %v1501, 2
      %v1503 = vadd.f32 %v1501, %v1502
      %v1504 = vrot.slane %v1503, 1
      %v1505 = vadd.f32 %v1503, %v1504
      %v1506 = vsel %vm802, %v421, 0.0
      %v1507 = vsel %vm802, %v423, 0.0
      %v1508 = vadd.f32 %v1506, %v1507
      %v1509 = vsel %vm802, %v425, 0.0
      %v1510 = vadd.f32 %v1508, %v1509
      %v1511 = vsel %vm802, %v427, 0.0
      %v1512 = vadd.f32 %v1510, %v1511
      %v1513 = vsel %vm810, %v429, 0.0
      %v1514 = vadd.f32 %v1512, %v1513
      %v1515 = vrot.slane %v1514, 4
      %v1516 = vadd.f32 %v1514, %v1515
      %v1517 = vrot.slane %v1516, 2
      %v1518 = vadd.f32 %v1516, %v1517
      %v1519 = vrot.slane %v1518, 1
      %v1520 = vadd.f32 %v1518, %v1519
      %v1521 = vadd.f32 %v430, %v432
      %v1522 = vadd.f32 %v1521, %v434
      %v1523 = vadd.f32 %v1522, %v436
      %v1524 = vsel %vm793, %v438, 0.0
      %v1525 = vadd.f32 %v1523, %v1524
      %v1526 = vrot.slane %v1525, 4
      %v1527 = vadd.f32 %v1525, %v1526
      %v1528 = vrot.slane %v1527, 2
      %v1529 = vadd.f32 %v1527, %v1528
      %v1530 = vrot.slane %v1529, 1
      %v1531 = vadd.f32 %v1529, %v1530
      %v1532 = vsel %vm802, %v431, 0.0
      %v1533 = vsel %vm802, %v433, 0.0
      %v1534 = vadd.f32 %v1532, %v1533
      %v1535 = vsel %vm802, %v435, 0.0
      %v1536 = vadd.f32 %v1534, %v1535
      %v1537 = vsel %vm802, %v437, 0.0
      %v1538 = vadd.f32 %v1536, %v1537
      %v1539 = vsel %vm810, %v439, 0.0
      %v1540 = vadd.f32 %v1538, %v1539
      %v1541 = vrot.slane %v1540, 4
      %v1542 = vadd.f32 %v1540, %v1541
      %v1543 = vrot.slane %v1542, 2
      %v1544 = vadd.f32 %v1542, %v1543
      %v1545 = vrot.slane %v1544, 1
      %v1546 = vadd.f32 %v1544, %v1545
      %v1547 = vadd.f32 %v440, %v442
      %v1548 = vadd.f32 %v1547, %v444
      %v1549 = vadd.f32 %v1548, %v446
      %v1550 = vsel %vm793, %v448, 0.0
      %v1551 = vadd.f32 %v1549, %v1550
      %v1552 = vrot.slane %v1551, 4
      %v1553 = vadd.f32 %v1551, %v1552
      %v1554 = vrot.slane %v1553, 2
      %v1555 = vadd.f32 %v1553, %v1554
      %v1556 = vrot.slane %v1555, 1
      %v1557 = vadd.f32 %v1555, %v1556
      %v1558 = vsel %vm802, %v441, 0.0
      %v1559 = vsel %vm802, %v443, 0.0
      %v1560 = vadd.f32 %v1558, %v1559
      %v1561 = vsel %vm802, %v445, 0.0
      %v1562 = vadd.f32 %v1560, %v1561
      %v1563 = vsel %vm802, %v447, 0.0
      %v1564 = vadd.f32 %v1562, %v1563
      %v1565 = vsel %vm810, %v449, 0.0
      %v1566 = vadd.f32 %v1564, %v1565
      %v1567 = vrot.slane %v1566, 4
      %v1568 = vadd.f32 %v1566, %v1567
      %v1569 = vrot.slane %v1568, 2
      %v1570 = vadd.f32 %v1568, %v1569
      %v1571 = vrot.slane %v1570, 1
      %v1572 = vadd.f32 %v1570, %v1571
      %v1573 = vadd.f32 %v450, %v452
      %v1574 = vadd.f32 %v1573, %v454
      %v1575 = vadd.f32 %v1574, %v456
      %v1576 = vsel %vm793, %v458, 0.0
      %v1577 = vadd.f32 %v1575, %v1576
      %v1578 = vrot.slane %v1577, 4
      %v1579 = vadd.f32 %v1577, %v1578
      %v1580 = vrot.slane %v1579, 2
      %v1581 = vadd.f32 %v1579, %v1580
      %v1582 = vrot.slane %v1581, 1
      %v1583 = vadd.f32 %v1581, %v1582
      %v1584 = vsel %vm802, %v451, 0.0
      %v1585 = vsel %vm802, %v453, 0.0
      %v1586 = vadd.f32 %v1584, %v1585
      %v1587 = vsel %vm802, %v455, 0.0
      %v1588 = vadd.f32 %v1586, %v1587
      %v1589 = vsel %vm802, %v457, 0.0
      %v1590 = vadd.f32 %v1588, %v1589
      %v1591 = vsel %vm810, %v459, 0.0
      %v1592 = vadd.f32 %v1590, %v1591
      %v1593 = vrot.slane %v1592, 4
      %v1594 = vadd.f32 %v1592, %v1593
      %v1595 = vrot.slane %v1594, 2
      %v1596 = vadd.f32 %v1594, %v1595
      %v1597 = vrot.slane %v1596, 1
      %v1598 = vadd.f32 %v1596, %v1597
      %v1599 = vadd.f32 %v460, %v462
      %v1600 = vadd.f32 %v1599, %v464
      %v1601 = vadd.f32 %v1600, %v466
      %v1602 = vsel %vm793, %v468, 0.0
      %v1603 = vadd.f32 %v1601, %v1602
      %v1604 = vrot.slane %v1603, 4
      %v1605 = vadd.f32 %v1603, %v1604
      %v1606 = vrot.slane %v1605, 2
      %v1607 = vadd.f32 %v1605, %v1606
      %v1608 = vrot.slane %v1607, 1
      %v1609 = vadd.f32 %v1607, %v1608
      %v1610 = vsel %vm802, %v461, 0.0
      %v1611 = vsel %vm802, %v463, 0.0
      %v1612 = vadd.f32 %v1610, %v1611
      %v1613 = vsel %vm802, %v465, 0.0
      %v1614 = vadd.f32 %v1612, %v1613
      %v1615 = vsel %vm802, %v467, 0.0
      %v1616 = vadd.f32 %v1614, %v1615
      %v1617 = vsel %vm810, %v469, 0.0
      %v1618 = vadd.f32 %v1616, %v1617
      %v1619 = vrot.slane %v1618, 4
      %v1620 = vadd.f32 %v1618, %v1619
      %v1621 = vrot.slane %v1620, 2
      %v1622 = vadd.f32 %v1620, %v1621
      %v1623 = vrot.slane %v1622, 1
      %v1624 = vadd.f32 %v1622, %v1623
      %v1625 = vadd.f32 %v470, %v472
      %v1626 = vadd.f32 %v1625, %v474
      %v1627 = vadd.f32 %v1626, %v476
      %v1628 = vsel %vm793, %v478, 0.0
      %v1629 = vadd.f32 %v1627, %v1628
      %v1630 = vrot.slane %v1629, 4
      %v1631 = vadd.f32 %v1629, %v1630
      %v1632 = vrot.slane %v1631, 2
      %v1633 = vadd.f32 %v1631, %v1632
      %v1634 = vrot.slane %v1633, 1
      %v1635 = vadd.f32 %v1633, %v1634
      %v1636 = vsel %vm802, %v471, 0.0
      %v1637 = vsel %vm802, %v473, 0.0
      %v1638 = vadd.f32 %v1636, %v1637
      %v1639 = vsel %vm802, %v475, 0.0
      %v1640 = vadd.f32 %v1638, %v1639
      %v1641 = vsel %vm802, %v477, 0.0
      %v1642 = vadd.f32 %v1640, %v1641
      %v1643 = vsel %vm810, %v479, 0.0
      %v1644 = vadd.f32 %v1642, %v1643
      %v1645 = vrot.slane %v1644, 4
      %v1646 = vadd.f32 %v1644, %v1645
      %v1647 = vrot.slane %v1646, 2
      %v1648 = vadd.f32 %v1646, %v1647
      %v1649 = vrot.slane %v1648, 1
      %v1650 = vadd.f32 %v1648, %v1649
      %v1651 = vadd.f32 %v480, %v482
      %v1652 = vadd.f32 %v1651, %v484
      %v1653 = vadd.f32 %v1652, %v486
      %v1654 = vsel %vm793, %v488, 0.0
      %v1655 = vadd.f32 %v1653, %v1654
      %v1656 = vrot.slane %v1655, 4
      %v1657 = vadd.f32 %v1655, %v1656
      %v1658 = vrot.slane %v1657, 2
      %v1659 = vadd.f32 %v1657, %v1658
      %v1660 = vrot.slane %v1659, 1
      %v1661 = vadd.f32 %v1659, %v1660
      %v1662 = vsel %vm802, %v481, 0.0
      %v1663 = vsel %vm802, %v483, 0.0
      %v1664 = vadd.f32 %v1662, %v1663
      %v1665 = vsel %vm802, %v485, 0.0
      %v1666 = vadd.f32 %v1664, %v1665
      %v1667 = vsel %vm802, %v487, 0.0
      %v1668 = vadd.f32 %v1666, %v1667
      %v1669 = vsel %vm810, %v489, 0.0
      %v1670 = vadd.f32 %v1668, %v1669
      %v1671 = vrot.slane %v1670, 4
      %v1672 = vadd.f32 %v1670, %v1671
      %v1673 = vrot.slane %v1672, 2
      %v1674 = vadd.f32 %v1672, %v1673
      %v1675 = vrot.slane %v1674, 1
      %v1676 = vadd.f32 %v1674, %v1675
      %v1677 = vadd.f32 %v490, %v492
      %v1678 = vadd.f32 %v1677, %v494
      %v1679 = vadd.f32 %v1678, %v496
      %v1680 = vsel %vm793, %v498, 0.0
      %v1681 = vadd.f32 %v1679, %v1680
      %v1682 = vrot.slane %v1681, 4
      %v1683 = vadd.f32 %v1681, %v1682
      %v1684 = vrot.slane %v1683, 2
      %v1685 = vadd.f32 %v1683, %v1684
      %v1686 = vrot.slane %v1685, 1
      %v1687 = vadd.f32 %v1685, %v1686
      %v1688 = vsel %vm802, %v491, 0.0
      %v1689 = vsel %vm802, %v493, 0.0
      %v1690 = vadd.f32 %v1688, %v1689
      %v1691 = vsel %vm802, %v495, 0.0
      %v1692 = vadd.f32 %v1690, %v1691
      %v1693 = vsel %vm802, %v497, 0.0
      %v1694 = vadd.f32 %v1692, %v1693
      %v1695 = vsel %vm810, %v499, 0.0
      %v1696 = vadd.f32 %v1694, %v1695
      %v1697 = vrot.slane %v1696, 4
      %v1698 = vadd.f32 %v1696, %v1697
      %v1699 = vrot.slane %v1698, 2
      %v1700 = vadd.f32 %v1698, %v1699
      %v1701 = vrot.slane %v1700, 1
      %v1702 = vadd.f32 %v1700, %v1701
      %v1703 = vadd.f32 %v500, %v502
      %v1704 = vadd.f32 %v1703, %v504
      %v1705 = vadd.f32 %v1704, %v506
      %v1706 = vsel %vm793, %v508, 0.0
      %v1707 = vadd.f32 %v1705, %v1706
      %v1708 = vrot.slane %v1707, 4
      %v1709 = vadd.f32 %v1707, %v1708
      %v1710 = vrot.slane %v1709, 2
      %v1711 = vadd.f32 %v1709, %v1710
      %v1712 = vrot.slane %v1711, 1
      %v1713 = vadd.f32 %v1711, %v1712
      %v1714 = vsel %vm802, %v501, 0.0
      %v1715 = vsel %vm802, %v503, 0.0
      %v1716 = vadd.f32 %v1714, %v1715
      %v1717 = vsel %vm802, %v505, 0.0
      %v1718 = vadd.f32 %v1716, %v1717
      %v1719 = vsel %vm802, %v507, 0.0
      %v1720 = vadd.f32 %v1718, %v1719
      %v1721 = vsel %vm810, %v509, 0.0
      %v1722 = vadd.f32 %v1720, %v1721
      %v1723 = vrot.slane %v1722, 4
      %v1724 = vadd.f32 %v1722, %v1723
      %v1725 = vrot.slane %v1724, 2
      %v1726 = vadd.f32 %v1724, %v1725
      %v1727 = vrot.slane %v1726, 1
      %v1728 = vadd.f32 %v1726, %v1727
      %v1729 = vadd.f32 %v510, %v512
      %v1730 = vadd.f32 %v1729, %v514
      %v1731 = vadd.f32 %v1730, %v516
      %v1732 = vsel %vm793, %v518, 0.0
      %v1733 = vadd.f32 %v1731, %v1732
      %v1734 = vrot.slane %v1733, 4
      %v1735 = vadd.f32 %v1733, %v1734
      %v1736 = vrot.slane %v1735, 2
      %v1737 = vadd.f32 %v1735, %v1736
      %v1738 = vrot.slane %v1737, 1
      %v1739 = vadd.f32 %v1737, %v1738
      %v1740 = vsel %vm802, %v511, 0.0
      %v1741 = vsel %vm802, %v513, 0.0
      %v1742 = vadd.f32 %v1740, %v1741
      %v1743 = vsel %vm802, %v515, 0.0
      %v1744 = vadd.f32 %v1742, %v1743
      %v1745 = vsel %vm802, %v517, 0.0
      %v1746 = vadd.f32 %v1744, %v1745
      %v1747 = vsel %vm810, %v519, 0.0
      %v1748 = vadd.f32 %v1746, %v1747
      %v1749 = vrot.slane %v1748, 4
      %v1750 = vadd.f32 %v1748, %v1749
      %v1751 = vrot.slane %v1750, 2
      %v1752 = vadd.f32 %v1750, %v1751
      %v1753 = vrot.slane %v1752, 1
      %v1754 = vadd.f32 %v1752, %v1753
      %v1755 = vadd.f32 %v520, %v522
      %v1756 = vadd.f32 %v1755, %v524
      %v1757 = vadd.f32 %v1756, %v526
      %v1758 = vsel %vm793, %v528, 0.0
      %v1759 = vadd.f32 %v1757, %v1758
      %v1760 = vrot.slane %v1759, 4
      %v1761 = vadd.f32 %v1759, %v1760
      %v1762 = vrot.slane %v1761, 2
      %v1763 = vadd.f32 %v1761, %v1762
      %v1764 = vrot.slane %v1763, 1
      %v1765 = vadd.f32 %v1763, %v1764
      %v1766 = vsel %vm802, %v521, 0.0
      %v1767 = vsel %vm802, %v523, 0.0
      %v1768 = vadd.f32 %v1766, %v1767
      %v1769 = vsel %vm802, %v525, 0.0
      %v1770 = vadd.f32 %v1768, %v1769
      %v1771 = vsel %vm802, %v527, 0.0
      %v1772 = vadd.f32 %v1770, %v1771
      %v1773 = vsel %vm810, %v529, 0.0
      %v1774 = vadd.f32 %v1772, %v1773
      %v1775 = vrot.slane %v1774, 4
      %v1776 = vadd.f32 %v1774, %v1775
      %v1777 = vrot.slane %v1776, 2
      %v1778 = vadd.f32 %v1776, %v1777
      %v1779 = vrot.slane %v1778, 1
      %v1780 = vadd.f32 %v1778, %v1779
      %v1781 = vadd.f32 %v530, %v532
      %v1782 = vadd.f32 %v1781, %v534
      %v1783 = vadd.f32 %v1782, %v536
      %v1784 = vsel %vm793, %v538, 0.0
      %v1785 = vadd.f32 %v1783, %v1784
      %v1786 = vrot.slane %v1785, 4
      %v1787 = vadd.f32 %v1785, %v1786
      %v1788 = vrot.slane %v1787, 2
      %v1789 = vadd.f32 %v1787, %v1788
      %v1790 = vrot.slane %v1789, 1
      %v1791 = vadd.f32 %v1789, %v1790
      %v1792 = vsel %vm802, %v531, 0.0
      %v1793 = vsel %vm802, %v533, 0.0
      %v1794 = vadd.f32 %v1792, %v1793
      %v1795 = vsel %vm802, %v535, 0.0
      %v1796 = vadd.f32 %v1794, %v1795
      %v1797 = vsel %vm802, %v537, 0.0
      %v1798 = vadd.f32 %v1796, %v1797
      %v1799 = vsel %vm810, %v539, 0.0
      %v1800 = vadd.f32 %v1798, %v1799
      %v1801 = vrot.slane %v1800, 4
      %v1802 = vadd.f32 %v1800, %v1801
      %v1803 = vrot.slane %v1802, 2
      %v1804 = vadd.f32 %v1802, %v1803
      %v1805 = vrot.slane %v1804, 1
      %v1806 = vadd.f32 %v1804, %v1805
      %v1807 = vadd.f32 %v540, %v542
      %v1808 = vadd.f32 %v1807, %v544
      %v1809 = vadd.f32 %v1808, %v546
      %v1810 = vsel %vm793, %v548, 0.0
      %v1811 = vadd.f32 %v1809, %v1810
      %v1812 = vrot.slane %v1811, 4
      %v1813 = vadd.f32 %v1811, %v1812
      %v1814 = vrot.slane %v1813, 2
      %v1815 = vadd.f32 %v1813, %v1814
      %v1816 = vrot.slane %v1815, 1
      %v1817 = vadd.f32 %v1815, %v1816
      %v1818 = vsel %vm802, %v541, 0.0
      %v1819 = vsel %vm802, %v543, 0.0
      %v1820 = vadd.f32 %v1818, %v1819
      %v1821 = vsel %vm802, %v545, 0.0
      %v1822 = vadd.f32 %v1820, %v1821
      %v1823 = vsel %vm802, %v547, 0.0
      %v1824 = vadd.f32 %v1822, %v1823
      %v1825 = vsel %vm810, %v549, 0.0
      %v1826 = vadd.f32 %v1824, %v1825
      %v1827 = vrot.slane %v1826, 4
      %v1828 = vadd.f32 %v1826, %v1827
      %v1829 = vrot.slane %v1828, 2
      %v1830 = vadd.f32 %v1828, %v1829
      %v1831 = vrot.slane %v1830, 1
      %v1832 = vadd.f32 %v1830, %v1831
      %v1833 = vadd.f32 %v550, %v552
      %v1834 = vadd.f32 %v1833, %v554
      %v1835 = vadd.f32 %v1834, %v556
      %v1836 = vsel %vm793, %v558, 0.0
      %v1837 = vadd.f32 %v1835, %v1836
      %v1838 = vrot.slane %v1837, 4
      %v1839 = vadd.f32 %v1837, %v1838
      %v1840 = vrot.slane %v1839, 2
      %v1841 = vadd.f32 %v1839, %v1840
      %v1842 = vrot.slane %v1841, 1
      %v1843 = vadd.f32 %v1841, %v1842
      %v1844 = vsel %vm802, %v551, 0.0
      %v1845 = vsel %vm802, %v553, 0.0
      %v1846 = vadd.f32 %v1844, %v1845
      %v1847 = vsel %vm802, %v555, 0.0
      %v1848 = vadd.f32 %v1846, %v1847
      %v1849 = vsel %vm802, %v557, 0.0
      %v1850 = vadd.f32 %v1848, %v1849
      %v1851 = vsel %vm810, %v559, 0.0
      %v1852 = vadd.f32 %v1850, %v1851
      %v1853 = vrot.slane %v1852, 4
      %v1854 = vadd.f32 %v1852, %v1853
      %v1855 = vrot.slane %v1854, 2
      %v1856 = vadd.f32 %v1854, %v1855
      %v1857 = vrot.slane %v1856, 1
      %v1858 = vadd.f32 %v1856, %v1857
      %v1859 = vadd.f32 %v560, %v562
      %v1860 = vadd.f32 %v1859, %v564
      %v1861 = vadd.f32 %v1860, %v566
      %v1862 = vsel %vm793, %v568, 0.0
      %v1863 = vadd.f32 %v1861, %v1862
      %v1864 = vrot.slane %v1863, 4
      %v1865 = vadd.f32 %v1863, %v1864
      %v1866 = vrot.slane %v1865, 2
      %v1867 = vadd.f32 %v1865, %v1866
      %v1868 = vrot.slane %v1867, 1
      %v1869 = vadd.f32 %v1867, %v1868
      %v1870 = vsel %vm802, %v561, 0.0
      %v1871 = vsel %vm802, %v563, 0.0
      %v1872 = vadd.f32 %v1870, %v1871
      %v1873 = vsel %vm802, %v565, 0.0
      %v1874 = vadd.f32 %v1872, %v1873
      %v1875 = vsel %vm802, %v567, 0.0
      %v1876 = vadd.f32 %v1874, %v1875
      %v1877 = vsel %vm810, %v569, 0.0
      %v1878 = vadd.f32 %v1876, %v1877
      %v1879 = vrot.slane %v1878, 4
      %v1880 = vadd.f32 %v1878, %v1879
      %v1881 = vrot.slane %v1880, 2
      %v1882 = vadd.f32 %v1880, %v1881
      %v1883 = vrot.slane %v1882, 1
      %v1884 = vadd.f32 %v1882, %v1883
      %v1885 = vadd.f32 %v570, %v572
      %v1886 = vadd.f32 %v1885, %v574
      %v1887 = vadd.f32 %v1886, %v576
      %v1888 = vsel %vm793, %v578, 0.0
      %v1889 = vadd.f32 %v1887, %v1888
      %v1890 = vrot.slane %v1889, 4
      %v1891 = vadd.f32 %v1889, %v1890
      %v1892 = vrot.slane %v1891, 2
      %v1893 = vadd.f32 %v1891, %v1892
      %v1894 = vrot.slane %v1893, 1
      %v1895 = vadd.f32 %v1893, %v1894
      %v1896 = vsel %vm802, %v571, 0.0
      %v1897 = vsel %vm802, %v573, 0.0
      %v1898 = vadd.f32 %v1896, %v1897
      %v1899 = vsel %vm802, %v575, 0.0
      %v1900 = vadd.f32 %v1898, %v1899
      %v1901 = vsel %vm802, %v577, 0.0
      %v1902 = vadd.f32 %v1900, %v1901
      %v1903 = vsel %vm810, %v579, 0.0
      %v1904 = vadd.f32 %v1902, %v1903
      %v1905 = vrot.slane %v1904, 4
      %v1906 = vadd.f32 %v1904, %v1905
      %v1907 = vrot.slane %v1906, 2
      %v1908 = vadd.f32 %v1906, %v1907
      %v1909 = vrot.slane %v1908, 1
      %v1910 = vadd.f32 %v1908, %v1909
      %v1911 = vadd.f32 %v580, %v582
      %v1912 = vadd.f32 %v1911, %v584
      %v1913 = vadd.f32 %v1912, %v586
      %v1914 = vsel %vm793, %v588, 0.0
      %v1915 = vadd.f32 %v1913, %v1914
      %v1916 = vrot.slane %v1915, 4
      %v1917 = vadd.f32 %v1915, %v1916
      %v1918 = vrot.slane %v1917, 2
      %v1919 = vadd.f32 %v1917, %v1918
      %v1920 = vrot.slane %v1919, 1
      %v1921 = vadd.f32 %v1919, %v1920
      %v1922 = vsel %vm802, %v581, 0.0
      %v1923 = vsel %vm802, %v583, 0.0
      %v1924 = vadd.f32 %v1922, %v1923
      %v1925 = vsel %vm802, %v585, 0.0
      %v1926 = vadd.f32 %v1924, %v1925
      %v1927 = vsel %vm802, %v587, 0.0
      %v1928 = vadd.f32 %v1926, %v1927
      %v1929 = vsel %vm810, %v589, 0.0
      %v1930 = vadd.f32 %v1928, %v1929
      %v1931 = vrot.slane %v1930, 4
      %v1932 = vadd.f32 %v1930, %v1931
      %v1933 = vrot.slane %v1932, 2
      %v1934 = vadd.f32 %v1932, %v1933
      %v1935 = vrot.slane %v1934, 1
      %v1936 = vadd.f32 %v1934, %v1935
      %v1937 = vadd.f32 %v590, %v592
      %v1938 = vadd.f32 %v1937, %v594
      %v1939 = vadd.f32 %v1938, %v596
      %v1940 = vsel %vm793, %v598, 0.0
      %v1941 = vadd.f32 %v1939, %v1940
      %v1942 = vrot.slane %v1941, 4
      %v1943 = vadd.f32 %v1941, %v1942
      %v1944 = vrot.slane %v1943, 2
      %v1945 = vadd.f32 %v1943, %v1944
      %v1946 = vrot.slane %v1945, 1
      %v1947 = vadd.f32 %v1945, %v1946
      %v1948 = vsel %vm802, %v591, 0.0
      %v1949 = vsel %vm802, %v593, 0.0
      %v1950 = vadd.f32 %v1948, %v1949
      %v1951 = vsel %vm802, %v595, 0.0
      %v1952 = vadd.f32 %v1950, %v1951
      %v1953 = vsel %vm802, %v597, 0.0
      %v1954 = vadd.f32 %v1952, %v1953
      %v1955 = vsel %vm810, %v599, 0.0
      %v1956 = vadd.f32 %v1954, %v1955
      %v1957 = vrot.slane %v1956, 4
      %v1958 = vadd.f32 %v1956, %v1957
      %v1959 = vrot.slane %v1958, 2
      %v1960 = vadd.f32 %v1958, %v1959
      %v1961 = vrot.slane %v1960, 1
      %v1962 = vadd.f32 %v1960, %v1961
      %v1963 = vadd.f32 %v600, %v602
      %v1964 = vadd.f32 %v1963, %v604
      %v1965 = vadd.f32 %v1964, %v606
      %v1966 = vsel %vm793, %v608, 0.0
      %v1967 = vadd.f32 %v1965, %v1966
      %v1968 = vrot.slane %v1967, 4
      %v1969 = vadd.f32 %v1967, %v1968
      %v1970 = vrot.slane %v1969, 2
      %v1971 = vadd.f32 %v1969, %v1970
      %v1972 = vrot.slane %v1971, 1
      %v1973 = vadd.f32 %v1971, %v1972
      %v1974 = vsel %vm802, %v601, 0.0
      %v1975 = vsel %vm802, %v603, 0.0
      %v1976 = vadd.f32 %v1974, %v1975
      %v1977 = vsel %vm802, %v605, 0.0
      %v1978 = vadd.f32 %v1976, %v1977
      %v1979 = vsel %vm802, %v607, 0.0
      %v1980 = vadd.f32 %v1978, %v1979
      %v1981 = vsel %vm810, %v609, 0.0
      %v1982 = vadd.f32 %v1980, %v1981
      %v1983 = vrot.slane %v1982, 4
      %v1984 = vadd.f32 %v1982, %v1983
      %v1985 = vrot.slane %v1984, 2
      %v1986 = vadd.f32 %v1984, %v1985
      %v1987 = vrot.slane %v1986, 1
      %v1988 = vadd.f32 %v1986, %v1987
      %v1989 = vadd.f32 %v610, %v612
      %v1990 = vadd.f32 %v1989, %v614
      %v1991 = vadd.f32 %v1990, %v616
      %v1992 = vsel %vm793, %v618, 0.0
      %v1993 = vadd.f32 %v1991, %v1992
      %v1994 = vrot.slane %v1993, 4
      %v1995 = vadd.f32 %v1993, %v1994
      %v1996 = vrot.slane %v1995, 2
      %v1997 = vadd.f32 %v1995, %v1996
      %v1998 = vrot.slane %v1997, 1
      %v1999 = vadd.f32 %v1997, %v1998
      %v2000 = vsel %vm802, %v611, 0.0
      %v2001 = vsel %vm802, %v613, 0.0
      %v2002 = vadd.f32 %v2000, %v2001
      %v2003 = vsel %vm802, %v615, 0.0
      %v2004 = vadd.f32 %v2002, %v2003
      %v2005 = vsel %vm802, %v617, 0.0
      %v2006 = vadd.f32 %v2004, %v2005
      %v2007 = vsel %vm810, %v619, 0.0
      %v2008 = vadd.f32 %v2006, %v2007
      %v2009 = vrot.slane %v2008, 4
      %v2010 = vadd.f32 %v2008, %v2009
      %v2011 = vrot.slane %v2010, 2
      %v2012 = vadd.f32 %v2010, %v2011
      %v2013 = vrot.slane %v2012, 1
      %v2014 = vadd.f32 %v2012, %v2013
      %v2015 = vadd.f32 %v620, %v622
      %v2016 = vadd.f32 %v2015, %v624
      %v2017 = vadd.f32 %v2016, %v626
      %v2018 = vsel %vm793, %v628, 0.0
      %v2019 = vadd.f32 %v2017, %v2018
      %v2020 = vrot.slane %v2019, 4
      %v2021 = vadd.f32 %v2019, %v2020
      %v2022 = vrot.slane %v2021, 2
      %v2023 = vadd.f32 %v2021, %v2022
      %v2024 = vrot.slane %v2023, 1
      %v2025 = vadd.f32 %v2023, %v2024
      %v2026 = vsel %vm802, %v621, 0.0
      %v2027 = vsel %vm802, %v623, 0.0
      %v2028 = vadd.f32 %v2026, %v2027
      %v2029 = vsel %vm802, %v625, 0.0
      %v2030 = vadd.f32 %v2028, %v2029
      %v2031 = vsel %vm802, %v627, 0.0
      %v2032 = vadd.f32 %v2030, %v2031
      %v2033 = vsel %vm810, %v629, 0.0
      %v2034 = vadd.f32 %v2032, %v2033
      %v2035 = vrot.slane %v2034, 4
      %v2036 = vadd.f32 %v2034, %v2035
      %v2037 = vrot.slane %v2036, 2
      %v2038 = vadd.f32 %v2036, %v2037
      %v2039 = vrot.slane %v2038, 1
      %v2040 = vadd.f32 %v2038, %v2039
      %v2041 = vadd.f32 %v630, %v632
      %v2042 = vadd.f32 %v2041, %v634
      %v2043 = vadd.f32 %v2042, %v636
      %v2044 = vsel %vm793, %v638, 0.0
      %v2045 = vadd.f32 %v2043, %v2044
      %v2046 = vrot.slane %v2045, 4
      %v2047 = vadd.f32 %v2045, %v2046
      %v2048 = vrot.slane %v2047, 2
      %v2049 = vadd.f32 %v2047, %v2048
      %v2050 = vrot.slane %v2049, 1
      %v2051 = vadd.f32 %v2049, %v2050
      %v2052 = vsel %vm802, %v631, 0.0
      %v2053 = vsel %vm802, %v633, 0.0
      %v2054 = vadd.f32 %v2052, %v2053
      %v2055 = vsel %vm802, %v635, 0.0
      %v2056 = vadd.f32 %v2054, %v2055
      %v2057 = vsel %vm802, %v637, 0.0
      %v2058 = vadd.f32 %v2056, %v2057
      %v2059 = vsel %vm810, %v639, 0.0
      %v2060 = vadd.f32 %v2058, %v2059
      %v2061 = vrot.slane %v2060, 4
      %v2062 = vadd.f32 %v2060, %v2061
      %v2063 = vrot.slane %v2062, 2
      %v2064 = vadd.f32 %v2062, %v2063
      %v2065 = vrot.slane %v2064, 1
      %v2066 = vadd.f32 %v2064, %v2065
      %v2067 = vadd.f32 %v640, %v642
      %v2068 = vadd.f32 %v2067, %v644
      %v2069 = vadd.f32 %v2068, %v646
      %v2070 = vsel %vm793, %v648, 0.0
      %v2071 = vadd.f32 %v2069, %v2070
      %v2072 = vrot.slane %v2071, 4
      %v2073 = vadd.f32 %v2071, %v2072
      %v2074 = vrot.slane %v2073, 2
      %v2075 = vadd.f32 %v2073, %v2074
      %v2076 = vrot.slane %v2075, 1
      %v2077 = vadd.f32 %v2075, %v2076
      %v2078 = vsel %vm802, %v641, 0.0
      %v2079 = vsel %vm802, %v643, 0.0
      %v2080 = vadd.f32 %v2078, %v2079
      %v2081 = vsel %vm802, %v645, 0.0
      %v2082 = vadd.f32 %v2080, %v2081
      %v2083 = vsel %vm802, %v647, 0.0
      %v2084 = vadd.f32 %v2082, %v2083
      %v2085 = vsel %vm810, %v649, 0.0
      %v2086 = vadd.f32 %v2084, %v2085
      %v2087 = vrot.slane %v2086, 4
      %v2088 = vadd.f32 %v2086, %v2087
      %v2089 = vrot.slane %v2088, 2
      %v2090 = vadd.f32 %v2088, %v2089
      %v2091 = vrot.slane %v2090, 1
      %v2092 = vadd.f32 %v2090, %v2091
      %v2093 = vadd.f32 %v650, %v652
      %v2094 = vadd.f32 %v2093, %v654
      %v2095 = vadd.f32 %v2094, %v656
      %v2096 = vsel %vm793, %v658, 0.0
      %v2097 = vadd.f32 %v2095, %v2096
      %v2098 = vrot.slane %v2097, 4
      %v2099 = vadd.f32 %v2097, %v2098
      %v2100 = vrot.slane %v2099, 2
      %v2101 = vadd.f32 %v2099, %v2100
      %v2102 = vrot.slane %v2101, 1
      %v2103 = vadd.f32 %v2101, %v2102
      %v2104 = vsel %vm802, %v651, 0.0
      %v2105 = vsel %vm802, %v653, 0.0
      %v2106 = vadd.f32 %v2104, %v2105
      %v2107 = vsel %vm802, %v655, 0.0
      %v2108 = vadd.f32 %v2106, %v2107
      %v2109 = vsel %vm802, %v657, 0.0
      %v2110 = vadd.f32 %v2108, %v2109
      %v2111 = vsel %vm810, %v659, 0.0
      %v2112 = vadd.f32 %v2110, %v2111
      %v2113 = vrot.slane %v2112, 4
      %v2114 = vadd.f32 %v2112, %v2113
      %v2115 = vrot.slane %v2114, 2
      %v2116 = vadd.f32 %v2114, %v2115
      %v2117 = vrot.slane %v2116, 1
      %v2118 = vadd.f32 %v2116, %v2117
      %v2119 = vadd.f32 %v660, %v662
      %v2120 = vadd.f32 %v2119, %v664
      %v2121 = vadd.f32 %v2120, %v666
      %v2122 = vsel %vm793, %v668, 0.0
      %v2123 = vadd.f32 %v2121, %v2122
      %v2124 = vrot.slane %v2123, 4
      %v2125 = vadd.f32 %v2123, %v2124
      %v2126 = vrot.slane %v2125, 2
      %v2127 = vadd.f32 %v2125, %v2126
      %v2128 = vrot.slane %v2127, 1
      %v2129 = vadd.f32 %v2127, %v2128
      %v2130 = vsel %vm802, %v661, 0.0
      %v2131 = vsel %vm802, %v663, 0.0
      %v2132 = vadd.f32 %v2130, %v2131
      %v2133 = vsel %vm802, %v665, 0.0
      %v2134 = vadd.f32 %v2132, %v2133
      %v2135 = vsel %vm802, %v667, 0.0
      %v2136 = vadd.f32 %v2134, %v2135
      %v2137 = vsel %vm810, %v669, 0.0
      %v2138 = vadd.f32 %v2136, %v2137
      %v2139 = vrot.slane %v2138, 4
      %v2140 = vadd.f32 %v2138, %v2139
      %v2141 = vrot.slane %v2140, 2
      %v2142 = vadd.f32 %v2140, %v2141
      %v2143 = vrot.slane %v2142, 1
      %v2144 = vadd.f32 %v2142, %v2143
      %v2145 = vadd.f32 %v670, %v672
      %v2146 = vadd.f32 %v2145, %v674
      %v2147 = vadd.f32 %v2146, %v676
      %v2148 = vsel %vm793, %v678, 0.0
      %v2149 = vadd.f32 %v2147, %v2148
      %v2150 = vrot.slane %v2149, 4
      %v2151 = vadd.f32 %v2149, %v2150
      %v2152 = vrot.slane %v2151, 2
      %v2153 = vadd.f32 %v2151, %v2152
      %v2154 = vrot.slane %v2153, 1
      %v2155 = vadd.f32 %v2153, %v2154
      %v2156 = vsel %vm802, %v671, 0.0
      %v2157 = vsel %vm802, %v673, 0.0
      %v2158 = vadd.f32 %v2156, %v2157
      %v2159 = vsel %vm802, %v675, 0.0
      %v2160 = vadd.f32 %v2158, %v2159
      %v2161 = vsel %vm802, %v677, 0.0
      %v2162 = vadd.f32 %v2160, %v2161
      %v2163 = vsel %vm810, %v679, 0.0
      %v2164 = vadd.f32 %v2162, %v2163
      %v2165 = vrot.slane %v2164, 4
      %v2166 = vadd.f32 %v2164, %v2165
      %v2167 = vrot.slane %v2166, 2
      %v2168 = vadd.f32 %v2166, %v2167
      %v2169 = vrot.slane %v2168, 1
      %v2170 = vadd.f32 %v2168, %v2169
      %v2171 = vadd.f32 %v680, %v682
      %v2172 = vadd.f32 %v2171, %v684
      %v2173 = vadd.f32 %v2172, %v686
      %v2174 = vsel %vm793, %v688, 0.0
      %v2175 = vadd.f32 %v2173, %v2174
      %v2176 = vrot.slane %v2175, 4
      %v2177 = vadd.f32 %v2175, %v2176
      %v2178 = vrot.slane %v2177, 2
      %v2179 = vadd.f32 %v2177, %v2178
      %v2180 = vrot.slane %v2179, 1
      %v2181 = vadd.f32 %v2179, %v2180
      %v2182 = vsel %vm802, %v681, 0.0
      %v2183 = vsel %vm802, %v683, 0.0
      %v2184 = vadd.f32 %v2182, %v2183
      %v2185 = vsel %vm802, %v685, 0.0
      %v2186 = vadd.f32 %v2184, %v2185
      %v2187 = vsel %vm802, %v687, 0.0
      %v2188 = vadd.f32 %v2186, %v2187
      %v2189 = vsel %vm810, %v689, 0.0
      %v2190 = vadd.f32 %v2188, %v2189
      %v2191 = vrot.slane %v2190, 4
      %v2192 = vadd.f32 %v2190, %v2191
      %v2193 = vrot.slane %v2192, 2
      %v2194 = vadd.f32 %v2192, %v2193
      %v2195 = vrot.slane %v2194, 1
      %v2196 = vadd.f32 %v2194, %v2195
      %v2197 = vadd.f32 %v690, %v692
      %v2198 = vadd.f32 %v2197, %v694
      %v2199 = vadd.f32 %v2198, %v696
      %v2200 = vsel %vm793, %v698, 0.0
      %v2201 = vadd.f32 %v2199, %v2200
      %v2202 = vrot.slane %v2201, 4
      %v2203 = vadd.f32 %v2201, %v2202
      %v2204 = vrot.slane %v2203, 2
      %v2205 = vadd.f32 %v2203, %v2204
      %v2206 = vrot.slane %v2205, 1
      %v2207 = vadd.f32 %v2205, %v2206
      %v2208 = vsel %vm802, %v691, 0.0
      %v2209 = vsel %vm802, %v693, 0.0
      %v2210 = vadd.f32 %v2208, %v2209
      %v2211 = vsel %vm802, %v695, 0.0
      %v2212 = vadd.f32 %v2210, %v2211
      %v2213 = vsel %vm802, %v697, 0.0
      %v2214 = vadd.f32 %v2212, %v2213
      %v2215 = vsel %vm810, %v699, 0.0
      %v2216 = vadd.f32 %v2214, %v2215
      %v2217 = vrot.slane %v2216, 4
      %v2218 = vadd.f32 %v2216, %v2217
      %v2219 = vrot.slane %v2218, 2
      %v2220 = vadd.f32 %v2218, %v2219
      %v2221 = vrot.slane %v2220, 1
      %v2222 = vadd.f32 %v2220, %v2221
      %v2223 = vadd.f32 %v700, %v702
      %v2224 = vadd.f32 %v2223, %v704
      %v2225 = vadd.f32 %v2224, %v706
      %v2226 = vsel %vm793, %v708, 0.0
      %v2227 = vadd.f32 %v2225, %v2226
      %v2228 = vrot.slane %v2227, 4
      %v2229 = vadd.f32 %v2227, %v2228
      %v2230 = vrot.slane %v2229, 2
      %v2231 = vadd.f32 %v2229, %v2230
      %v2232 = vrot.slane %v2231, 1
      %v2233 = vadd.f32 %v2231, %v2232
      %v2234 = vsel %vm802, %v701, 0.0
      %v2235 = vsel %vm802, %v703, 0.0
      %v2236 = vadd.f32 %v2234, %v2235
      %v2237 = vsel %vm802, %v705, 0.0
      %v2238 = vadd.f32 %v2236, %v2237
      %v2239 = vsel %vm802, %v707, 0.0
      %v2240 = vadd.f32 %v2238, %v2239
      %v2241 = vsel %vm810, %v709, 0.0
      %v2242 = vadd.f32 %v2240, %v2241
      %v2243 = vrot.slane %v2242, 4
      %v2244 = vadd.f32 %v2242, %v2243
      %v2245 = vrot.slane %v2244, 2
      %v2246 = vadd.f32 %v2244, %v2245
      %v2247 = vrot.slane %v2246, 1
      %v2248 = vadd.f32 %v2246, %v2247
      %v2249 = vadd.f32 %v710, %v712
      %v2250 = vadd.f32 %v2249, %v714
      %v2251 = vadd.f32 %v2250, %v716
      %v2252 = vsel %vm793, %v718, 0.0
      %v2253 = vadd.f32 %v2251, %v2252
      %v2254 = vrot.slane %v2253, 4
      %v2255 = vadd.f32 %v2253, %v2254
      %v2256 = vrot.slane %v2255, 2
      %v2257 = vadd.f32 %v2255, %v2256
      %v2258 = vrot.slane %v2257, 1
      %v2259 = vadd.f32 %v2257, %v2258
      %v2260 = vsel %vm802, %v711, 0.0
      %v2261 = vsel %vm802, %v713, 0.0
      %v2262 = vadd.f32 %v2260, %v2261
      %v2263 = vsel %vm802, %v715, 0.0
      %v2264 = vadd.f32 %v2262, %v2263
      %v2265 = vsel %vm802, %v717, 0.0
      %v2266 = vadd.f32 %v2264, %v2265
      %v2267 = vsel %vm810, %v719, 0.0
      %v2268 = vadd.f32 %v2266, %v2267
      %v2269 = vrot.slane %v2268, 4
      %v2270 = vadd.f32 %v2268, %v2269
      %v2271 = vrot.slane %v2270, 2
      %v2272 = vadd.f32 %v2270, %v2271
      %v2273 = vrot.slane %v2272, 1
      %v2274 = vadd.f32 %v2272, %v2273
      %v2275 = vadd.f32 %v720, %v722
      %v2276 = vadd.f32 %v2275, %v724
      %v2277 = vadd.f32 %v2276, %v726
      %v2278 = vsel %vm793, %v728, 0.0
      %v2279 = vadd.f32 %v2277, %v2278
      %v2280 = vrot.slane %v2279, 4
      %v2281 = vadd.f32 %v2279, %v2280
      %v2282 = vrot.slane %v2281, 2
      %v2283 = vadd.f32 %v2281, %v2282
      %v2284 = vrot.slane %v2283, 1
      %v2285 = vadd.f32 %v2283, %v2284
      %v2286 = vsel %vm802, %v721, 0.0
      %v2287 = vsel %vm802, %v723, 0.0
      %v2288 = vadd.f32 %v2286, %v2287
      %v2289 = vsel %vm802, %v725, 0.0
      %v2290 = vadd.f32 %v2288, %v2289
      %v2291 = vsel %vm802, %v727, 0.0
      %v2292 = vadd.f32 %v2290, %v2291
      %v2293 = vsel %vm810, %v729, 0.0
      %v2294 = vadd.f32 %v2292, %v2293
      %v2295 = vrot.slane %v2294, 4
      %v2296 = vadd.f32 %v2294, %v2295
      %v2297 = vrot.slane %v2296, 2
      %v2298 = vadd.f32 %v2296, %v2297
      %v2299 = vrot.slane %v2298, 1
      %v2300 = vadd.f32 %v2298, %v2299
      %v2301 = vadd.f32 %v730, %v732
      %v2302 = vadd.f32 %v2301, %v734
      %v2303 = vadd.f32 %v2302, %v736
      %v2304 = vsel %vm793, %v738, 0.0
      %v2305 = vadd.f32 %v2303, %v2304
      %v2306 = vrot.slane %v2305, 4
      %v2307 = vadd.f32 %v2305, %v2306
      %v2308 = vrot.slane %v2307, 2
      %v2309 = vadd.f32 %v2307, %v2308
      %v2310 = vrot.slane %v2309, 1
      %v2311 = vadd.f32 %v2309, %v2310
      %v2312 = vsel %vm802, %v731, 0.0
      %v2313 = vsel %vm802, %v733, 0.0
      %v2314 = vadd.f32 %v2312, %v2313
      %v2315 = vsel %vm802, %v735, 0.0
      %v2316 = vadd.f32 %v2314, %v2315
      %v2317 = vsel %vm802, %v737, 0.0
      %v2318 = vadd.f32 %v2316, %v2317
      %v2319 = vsel %vm810, %v739, 0.0
      %v2320 = vadd.f32 %v2318, %v2319
      %v2321 = vrot.slane %v2320, 4
      %v2322 = vadd.f32 %v2320, %v2321
      %v2323 = vrot.slane %v2322, 2
      %v2324 = vadd.f32 %v2322, %v2323
      %v2325 = vrot.slane %v2324, 1
      %v2326 = vadd.f32 %v2324, %v2325
      %v2327 = vadd.f32 %v740, %v742
      %v2328 = vadd.f32 %v2327, %v744
      %v2329 = vadd.f32 %v2328, %v746
      %v2330 = vsel %vm793, %v748, 0.0
      %v2331 = vadd.f32 %v2329, %v2330
      %v2332 = vrot.slane %v2331, 4
      %v2333 = vadd.f32 %v2331, %v2332
      %v2334 = vrot.slane %v2333, 2
      %v2335 = vadd.f32 %v2333, %v2334
      %v2336 = vrot.slane %v2335, 1
      %v2337 = vadd.f32 %v2335, %v2336
      %v2338 = vsel %vm802, %v741, 0.0
      %v2339 = vsel %vm802, %v743, 0.0
      %v2340 = vadd.f32 %v2338, %v2339
      %v2341 = vsel %vm802, %v745, 0.0
      %v2342 = vadd.f32 %v2340, %v2341
      %v2343 = vsel %vm802, %v747, 0.0
      %v2344 = vadd.f32 %v2342, %v2343
      %v2345 = vsel %vm810, %v749, 0.0
      %v2346 = vadd.f32 %v2344, %v2345
      %v2347 = vrot.slane %v2346, 4
      %v2348 = vadd.f32 %v2346, %v2347
      %v2349 = vrot.slane %v2348, 2
      %v2350 = vadd.f32 %v2348, %v2349
      %v2351 = vrot.slane %v2350, 1
      %v2352 = vadd.f32 %v2350, %v2351
      %v2353 = vadd.f32 %v750, %v752
      %v2354 = vadd.f32 %v2353, %v754
      %v2355 = vadd.f32 %v2354, %v756
      %v2356 = vsel %vm793, %v758, 0.0
      %v2357 = vadd.f32 %v2355, %v2356
      %v2358 = vrot.slane %v2357, 4
      %v2359 = vadd.f32 %v2357, %v2358
      %v2360 = vrot.slane %v2359, 2
      %v2361 = vadd.f32 %v2359, %v2360
      %v2362 = vrot.slane %v2361, 1
      %v2363 = vadd.f32 %v2361, %v2362
      %v2364 = vsel %vm802, %v751, 0.0
      %v2365 = vsel %vm802, %v753, 0.0
      %v2366 = vadd.f32 %v2364, %v2365
      %v2367 = vsel %vm802, %v755, 0.0
      %v2368 = vadd.f32 %v2366, %v2367
      %v2369 = vsel %vm802, %v757, 0.0
      %v2370 = vadd.f32 %v2368, %v2369
      %v2371 = vsel %vm810, %v759, 0.0
      %v2372 = vadd.f32 %v2370, %v2371
      %v2373 = vrot.slane %v2372, 4
      %v2374 = vadd.f32 %v2372, %v2373
      %v2375 = vrot.slane %v2374, 2
      %v2376 = vadd.f32 %v2374, %v2375
      %v2377 = vrot.slane %v2376, 1
      %v2378 = vadd.f32 %v2376, %v2377
      %v2379 = vadd.f32 %v760, %v762
      %v2380 = vadd.f32 %v2379, %v764
      %v2381 = vadd.f32 %v2380, %v766
      %v2382 = vsel %vm793, %v768, 0.0
      %v2383 = vadd.f32 %v2381, %v2382
      %v2384 = vrot.slane %v2383, 4
      %v2385 = vadd.f32 %v2383, %v2384
      %v2386 = vrot.slane %v2385, 2
      %v2387 = vadd.f32 %v2385, %v2386
      %v2388 = vrot.slane %v2387, 1
      %v2389 = vadd.f32 %v2387, %v2388
      %v2390 = vsel %vm802, %v761, 0.0
      %v2391 = vsel %vm802, %v763, 0.0
      %v2392 = vadd.f32 %v2390, %v2391
      %v2393 = vsel %vm802, %v765, 0.0
      %v2394 = vadd.f32 %v2392, %v2393
      %v2395 = vsel %vm802, %v767, 0.0
      %v2396 = vadd.f32 %v2394, %v2395
      %v2397 = vsel %vm810, %v769, 0.0
      %v2398 = vadd.f32 %v2396, %v2397
      %v2399 = vrot.slane %v2398, 4
      %v2400 = vadd.f32 %v2398, %v2399
      %v2401 = vrot.slane %v2400, 2
      %v2402 = vadd.f32 %v2400, %v2401
      %v2403 = vrot.slane %v2402, 1
      %v2404 = vadd.f32 %v2402, %v2403
      %v2405 = vadd.f32 %v770, %v772
      %v2406 = vadd.f32 %v2405, %v774
      %v2407 = vadd.f32 %v2406, %v776
      %v2408 = vsel %vm793, %v778, 0.0
      %v2409 = vadd.f32 %v2407, %v2408
      %v2410 = vrot.slane %v2409, 4
      %v2411 = vadd.f32 %v2409, %v2410
      %v2412 = vrot.slane %v2411, 2
      %v2413 = vadd.f32 %v2411, %v2412
      %v2414 = vrot.slane %v2413, 1
      %v2415 = vadd.f32 %v2413, %v2414
      %v2416 = vsel %vm802, %v771, 0.0
      %v2417 = vsel %vm802, %v773, 0.0
      %v2418 = vadd.f32 %v2416, %v2417
      %v2419 = vsel %vm802, %v775, 0.0
      %v2420 = vadd.f32 %v2418, %v2419
      %v2421 = vsel %vm802, %v777, 0.0
      %v2422 = vadd.f32 %v2420, %v2421
      %v2423 = vsel %vm810, %v779, 0.0
      %v2424 = vadd.f32 %v2422, %v2423
      %v2425 = vrot.slane %v2424, 4
      %v2426 = vadd.f32 %v2424, %v2425
      %v2427 = vrot.slane %v2426, 2
      %v2428 = vadd.f32 %v2426, %v2427
      %v2429 = vrot.slane %v2428, 1
      %v2430 = vadd.f32 %v2428, %v2429
      %v2431 = vadd.f32 %v780, %v782
      %v2432 = vadd.f32 %v2431, %v784
      %v2433 = vadd.f32 %v2432, %v786
      %v2434 = vsel %vm793, %v788, 0.0
      %v2435 = vadd.f32 %v2433, %v2434
      %v2436 = vrot.slane %v2435, 4
      %v2437 = vadd.f32 %v2435, %v2436
      %v2438 = vrot.slane %v2437, 2
      %v2439 = vadd.f32 %v2437, %v2438
      %v2440 = vrot.slane %v2439, 1
      %v2441 = vadd.f32 %v2439, %v2440
      %v2442 = vsel %vm802, %v781, 0.0
      %v2443 = vsel %vm802, %v783, 0.0
      %v2444 = vadd.f32 %v2442, %v2443
      %v2445 = vsel %vm802, %v785, 0.0
      %v2446 = vadd.f32 %v2444, %v2445
      %v2447 = vsel %vm802, %v787, 0.0
      %v2448 = vadd.f32 %v2446, %v2447
      %v2449 = vsel %vm810, %v789, 0.0
      %v2450 = vadd.f32 %v2448, %v2449
      %v2451 = vrot.slane %v2450, 4
      %v2452 = vadd.f32 %v2450, %v2451
      %v2453 = vrot.slane %v2452, 2
      %v2454 = vadd.f32 %v2452, %v2453
      %v2455 = vrot.slane %v2454, 1
      %v2456 = vadd.f32 %v2454, %v2455
      %v2457 = vld [vmem:[%s1] sm:$0xff]
      %v2458 = vld [vmem:[%s1 + $0x8] sm:$0xff]
      %v2459 = vld [vmem:[%s1 + $0x10] sm:$0xff]
      %v2460 = vld [vmem:[%s1 + $0x18] sm:$0xff]
      %v2461 = vld [vmem:[%s1 + $0x20] sm:$0xff]
      %v2462 = vld [vmem:[%s1 + $0x28] sm:$0xff]
      %v2463 = vld [vmem:[%s1 + $0x30] sm:$0xff]
      %v2464 = vld [vmem:[%s1 + $0x38] sm:$0xff]
      %v2465 = vld [vmem:[%s1 + $0x40] sm:$0xff]
      %v2466 = vld [vmem:[%s1 + $0x48] sm:$0xff]
      %v2467 = vld [vmem:[%s1 + $0x50] sm:$0xff]
      %v2468 = vld [vmem:[%s1 + $0x58] sm:$0xff]
      %v2469 = vld [vmem:[%s1 + $0x60] sm:$0xff]
      %v2470 = vld [vmem:[%s1 + $0x68] sm:$0xff]
      %v2471 = vld [vmem:[%s1 + $0x70] sm:$0xff]
      %v2472 = vld [vmem:[%s1 + $0x78] sm:$0xff]
      %v2473 = vld [vmem:[%s1 + $0x80] sm:$0xff]
      %v2474 = vld [vmem:[%s1 + $0x88] sm:$0xff]
      %vm2603 = vcmask 1041409
      %v2604 = vsel %vm2603, %v829, %v801
      %vm2605 = vcmask 1042434
      %v2606 = vsel %vm2605, %v855, %v2604
      %vm2607 = vcmask 1043459
      %v2608 = vsel %vm2607, %v881, %v2606
      %vm2609 = vcmask 1044484
      %v2610 = vsel %vm2609, %v907, %v2608
      %vm2611 = vcmask 1045509
      %v2612 = vsel %vm2611, %v933, %v2610
      %vm2613 = vcmask 1046534
      %v2614 = vsel %vm2613, %v959, %v2612
      %vm2615 = vcmask 1047559
      %v2616 = vsel %vm2615, %v985, %v2614
      %v2617 = vsel %vm2603, %v844, %v818
      %v2618 = vsel %vm2605, %v870, %v2617
      %v2619 = vsel %vm2607, %v896, %v2618
      %v2620 = vsel %vm2609, %v922, %v2619
      %v2621 = vsel %vm2611, %v948, %v2620
      %v2622 = vsel %vm2613, %v974, %v2621
      %v2623 = vsel %vm2615, %v1000, %v2622
      %v2624 = vsel %vm2603, %v1037, %v1011
      %v2625 = vsel %vm2605, %v1063, %v2624
      %v2626 = vsel %vm2607, %v1089, %v2625
      %v2627 = vsel %vm2609, %v1115, %v2626
      %v2628 = vsel %vm2611, %v1141, %v2627
      %v2629 = vsel %vm2613, %v1167, %v2628
      %v2630 = vsel %vm2615, %v1193, %v2629
      %v2631 = vsel %vm2603, %v1052, %v1026
      %v2632 = vsel %vm2605, %v1078, %v2631
      %v2633 = vsel %vm2607, %v1104, %v2632
      %v2634 = vsel %vm2609, %v1130, %v2633
      %v2635 = vsel %vm2611, %v1156, %v2634
      %v2636 = vsel %vm2613, %v1182, %v2635
      %v2637 = vsel %vm2615, %v1208, %v2636
      %v2638 = vsel %vm2603, %v1245, %v1219
      %v2639 = vsel %vm2605, %v1271, %v2638
      %v2640 = vsel %vm2607, %v1297, %v2639
      %v2641 = vsel %vm2609, %v1323, %v2640
      %v2642 = vsel %vm2611, %v1349, %v2641
      %v2643 = vsel %vm2613, %v1375, %v2642
      %v2644 = vsel %vm2615, %v1401, %v2643
      %v2645 = vsel %vm2603, %v1260, %v1234
      %v2646 = vsel %vm2605, %v1286, %v2645
      %v2647 = vsel %vm2607, %v1312, %v2646
      %v2648 = vsel %vm2609, %v1338, %v2647
      %v2649 = vsel %vm2611, %v1364, %v2648
      %v2650 = vsel %vm2613, %v1390, %v2649
      %v2651 = vsel %vm2615, %v1416, %v2650
      %v2652 = vsel %vm2603, %v1453, %v1427
      %v2653 = vsel %vm2605, %v1479, %v2652
      %v2654 = vsel %vm2607, %v1505, %v2653
      %v2655 = vsel %vm2609, %v1531, %v2654
      %v2656 = vsel %vm2611, %v1557, %v2655
      %v2657 = vsel %vm2613, %v1583, %v2656
      %v2658 = vsel %vm2615, %v1609, %v2657
      %v2659 = vsel %vm2603, %v1468, %v1442
      %v2660 = vsel %vm2605, %v1494, %v2659
      %v2661 = vsel %vm2607, %v1520, %v2660
      %v2662 = vsel %vm2609, %v1546, %v2661
      %v2663 = vsel %vm2611, %v1572, %v2662
      %v2664 = vsel %vm2613, %v1598, %v2663
      %v2665 = vsel %vm2615, %v1624, %v2664
      %v2666 = vsel %vm2603, %v1661, %v1635
      %v2667 = vsel %vm2605, %v1687, %v2666
      %v2668 = vsel %vm2607, %v1713, %v2667
      %v2669 = vsel %vm2609, %v1739, %v2668
      %v2670 = vsel %vm2611, %v1765, %v2669
      %v2671 = vsel %vm2613, %v1791, %v2670
      %v2672 = vsel %vm2615, %v1817, %v2671
      %v2673 = vsel %vm2603, %v1676, %v1650
      %v2674 = vsel %vm2605, %v1702, %v2673
      %v2675 = vsel %vm2607, %v1728, %v2674
      %v2676 = vsel %vm2609, %v1754, %v2675
      %v2677 = vsel %vm2611, %v1780, %v2676
      %v2678 = vsel %vm2613, %v1806, %v2677
      %v2679 = vsel %vm2615, %v1832, %v2678
      %v2680 = vsel %vm2603, %v1869, %v1843
      %v2681 = vsel %vm2605, %v1895, %v2680
      %v2682 = vsel %vm2607, %v1921, %v2681
      %v2683 = vsel %vm2609, %v1947, %v2682
      %v2684 = vsel %vm2611, %v1973, %v2683
      %v2685 = vsel %vm2613, %v1999, %v2684
      %v2686 = vsel %vm2615, %v2025, %v2685
      %v2687 = vsel %vm2603, %v1884, %v1858
      %v2688 = vsel %vm2605, %v1910, %v2687
      %v2689 = vsel %vm2607, %v1936, %v2688
      %v2690 = vsel %vm2609, %v1962, %v2689
      %v2691 = vsel %vm2611, %v1988, %v2690
      %v2692 = vsel %vm2613, %v2014, %v2691
      %v2693 = vsel %vm2615, %v2040, %v2692
      %v2694 = vsel %vm2603, %v2077, %v2051
      %v2695 = vsel %vm2605, %v2103, %v2694
      %v2696 = vsel %vm2607, %v2129, %v2695
      %v2697 = vsel %vm2609, %v2155, %v2696
      %v2698 = vsel %vm2611, %v2181, %v2697
      %v2699 = vsel %vm2613, %v2207, %v2698
      %v2700 = vsel %vm2615, %v2233, %v2699
      %v2701 = vsel %vm2603, %v2092, %v2066
      %v2702 = vsel %vm2605, %v2118, %v2701
      %v2703 = vsel %vm2607, %v2144, %v2702
      %v2704 = vsel %vm2609, %v2170, %v2703
      %v2705 = vsel %vm2611, %v2196, %v2704
      %v2706 = vsel %vm2613, %v2222, %v2705
      %v2707 = vsel %vm2615, %v2248, %v2706
      %v2708 = vsel %vm2603, %v2285, %v2259
      %v2709 = vsel %vm2605, %v2311, %v2708
      %v2710 = vsel %vm2607, %v2337, %v2709
      %v2711 = vsel %vm2609, %v2363, %v2710
      %v2712 = vsel %vm2611, %v2389, %v2711
      %v2713 = vsel %vm2613, %v2415, %v2712
      %v2714 = vsel %vm2615, %v2441, %v2713
      %v2715 = vsel %vm2603, %v2300, %v2274
      %v2716 = vsel %vm2605, %v2326, %v2715
      %v2717 = vsel %vm2607, %v2352, %v2716
      %v2718 = vsel %vm2609, %v2378, %v2717
      %v2719 = vsel %vm2611, %v2404, %v2718
      %v2720 = vsel %vm2613, %v2430, %v2719
      %v2721 = vsel %vm2615, %v2456, %v2720
      %v2730 = vsel %vm802, %v2623, 0
      %v2732 = vsel %vm802, %v2637, 0
      %v2734 = vsel %vm802, %v2651, 0
      %v2736 = vsel %vm802, %v2665, 0
      %v2738 = vsel %vm802, %v2679, 0
      %v2740 = vsel %vm802, %v2693, 0
      %v2742 = vsel %vm802, %v2707, 0
      %v2744 = vsel %vm802, %v2721, 0
      %2746 = vmatprep.subr.mxu0 0.0
      %2747 = vmatpush1.msra.mxu0 %v2457
      %2748 = vmatprep.subr.mxu0 0.0
      %2749 = vmatpush1.msra.mxu0 %v2458
      %2750 = vmatprep.subr.mxu0 0.0
      %2751 = vmatpush1.msra.mxu0 %v2459
      %2752 = vmatprep.subr.mxu0 0.0
      %2753 = vmatpush1.msra.mxu0 %v2460
      %2754 = vmatprep.subr.mxu0 0.0
      %2755 = vmatpush1.msra.mxu0 %v2461
      %2756 = vmatprep.subr.mxu0 0.0
      %2757 = vmatpush1.msra.mxu0 %v2462
      %2758 = vmatprep.subr.mxu0 0.0
      %2759 = vmatpush1.msra.mxu0 %v2463
      %2760 = vmatprep.subr.mxu0 0.0
      %2761 = vmatpush1.msra.mxu0 %v2464
      %2762 = vmatprep.subr.mxu0 0.0
      %2763 = vmatpush1.msra.mxu0 %v2465
      %2764 = vmatprep.subr.mxu0 0.0
      %2765 = vmatpush1.msra.mxu0 %v2466
      %2766 = vmatprep.subr.mxu0 0.0
      %2767 = vmatpush1.msra.mxu0 %v2467
      %2768 = vmatprep.subr.mxu0 0.0
      %2769 = vmatpush1.msra.mxu0 %v2468
      %2770 = vmatprep.subr.mxu0 0.0
      %2771 = vmatpush1.msra.mxu0 %v2469
      %2772 = vmatprep.subr.mxu0 0.0
      %2773 = vmatpush1.msra.mxu0 %v2470
      %2774 = vmatprep.subr.mxu0 0.0
      %2775 = vmatpush1.msra.mxu0 %v2471
      %2776 = vmatprep.subr.mxu0 0.0
      %2777 = vmatpush1.msra.mxu0 %v2472
      %2778 = vmatprep.subr.mxu0 0.0
      %2779 = vmatpush1.msra.mxu0 %v2473
      %2780 = vmatprep.subr.mxu0 0.0
      %2781 = vmatpush1.msra.mxu0 %v2474
      %2782 = vmatprep.subr.mxu0 0.0
      %2783 = vmatpush1.msra.mxu0 0.0
      %2784 = vmatprep.subr.mxu0 0.0
      %2785 = vmatpush1.msra.mxu0 0.0
      %2786 = vmatprep.subr.mxu0 0.0
      %2787 = vmatpush1.msra.mxu0 0.0
      %2788 = vmatprep.subr.mxu0 0.0
      %2789 = vmatpush1.msra.mxu0 0.0
      %2790 = vmatprep.subr.mxu0 0.0
      %2791 = vmatpush1.msra.mxu0 0.0
      %2792 = vmatprep.subr.mxu0 0.0
      %2793 = vmatpush1.msra.mxu0 0.0
      %2794 = vmatprep.subr.mxu0 0.0
      %2795 = vmatpush1.msra.mxu0 0.0
      %2796 = vmatprep.subr.mxu0 0.0
      %2797 = vmatpush1.msra.mxu0 0.0
      %2798 = vmatprep.subr.mxu0 0.0
      %2799 = vmatpush1.msra.mxu0 0.0
      %2800 = vmatprep.subr.mxu0 0.0
      %2801 = vmatpush1.msra.mxu0 0.0
      %2802 = vmatprep.subr.mxu0 0.0
      %2803 = vmatpush1.msra.mxu0 0.0
      %2804 = vmatprep.subr.mxu0 0.0
      %2805 = vmatpush1.msra.mxu0 0.0
      %2806 = vmatprep.subr.mxu0 0.0
      %2807 = vmatpush1.msra.mxu0 0.0
      %2808 = vmatprep.subr.mxu0 0.0
      %2809 = vmatpush1.msra.mxu0 0.0
      %2810 = vmatprep.mubr.f32.mxu0 %v2730
      %2811 = vmatmul.mubr.f32.gmra.mrb[0].mxu0 %v2616
      %v2812 = vpop.f32.mrb[0].mxu0
      %v2813 = vadd.f32 0.0, %v2812
      %v2814 = vpop.f32.mrb[0].mxu0
      %2815 = vmatprep.mubr.f32.mxu0 %v2732
      %2816 = vmatmul.mubr.f32.gmra.mrb[0].mxu0 %v2630
      %v2817 = vpop.f32.mrb[0].mxu0
      %v2818 = vadd.f32 0.0, %v2817
      %v2819 = vpop.f32.mrb[0].mxu0
      %2820 = vmatprep.mubr.f32.mxu0 %v2734
      %2821 = vmatmul.mubr.f32.gmra.mrb[0].mxu0 %v2644
      %v2822 = vpop.f32.mrb[0].mxu0
      %v2823 = vadd.f32 0.0, %v2822
      %v2824 = vpop.f32.mrb[0].mxu0
      %2825 = vmatprep.mubr.f32.mxu0 %v2736
      %2826 = vmatmul.mubr.f32.gmra.mrb[0].mxu0 %v2658
      %v2827 = vpop.f32.mrb[0].mxu0
      %v2828 = vadd.f32 0.0, %v2827
      %v2829 = vpop.f32.mrb[0].mxu0
      %2830 = vmatprep.mubr.f32.mxu0 %v2738
      %2831 = vmatmul.mubr.f32.gmra.mrb[0].mxu0 %v2672
      %v2832 = vpop.f32.mrb[0].mxu0
      %v2833 = vadd.f32 0.0, %v2832
      %v2834 = vpop.f32.mrb[0].mxu0
      %2835 = vmatprep.mubr.f32.mxu0 %v2740
      %2836 = vmatmul.mubr.f32.gmra.mrb[0].mxu0 %v2686
      %v2837 = vpop.f32.mrb[0].mxu0
      %v2838 = vadd.f32 0.0, %v2837
      %v2839 = vpop.f32.mrb[0].mxu0
      %2840 = vmatprep.mubr.f32.mxu0 %v2742
      %2841 = vmatmul.mubr.f32.gmra.mrb[0].mxu0 %v2700
      %v2842 = vpop.f32.mrb[0].mxu0
      %v2843 = vadd.f32 0.0, %v2842
      %v2844 = vpop.f32.mrb[0].mxu0
      %2845 = vmatprep.mubr.f32.mxu0 %v2744
      %2846 = vmatmul.mubr.f32.gmra.mrb[0].mxu0 %v2714
      %v2847 = vpop.f32.mrb[0].mxu0
      %v2848 = vadd.f32 0.0, %v2847
      %v2849 = vpop.f32.mrb[0].mxu0
      %2850 = vdwg.mxu0
      %v2851 = vmul.f32 %v2813, 0.00077160494
      %v2852 = vmul.f32 %v2818, 0.00077160494
      %v2853 = vmul.f32 %v2823, 0.00077160494
      %v2854 = vmul.f32 %v2828, 0.00077160494
      %v2855 = vmul.f32 %v2833, 0.00077160494
      %v2856 = vmul.f32 %v2838, 0.00077160494
      %v2857 = vmul.f32 %v2843, 0.00077160494
      %v2858 = vmul.f32 %v2848, 0.00077160494
      %vm2859 = vcmask 31744
      %2860 = vst.msk [vmem:[%s148] sm:$0xff] %vm2859, %v2851
      %2861 = vst.msk [vmem:[%s148 + $0x8] sm:$0xff] %vm2859, %v2852
      %2862 = vst.msk [vmem:[%s148 + $0x10] sm:$0xff] %vm2859, %v2853
      %2863 = vst.msk [vmem:[%s148 + $0x18] sm:$0xff] %vm2859, %v2854
      %2864 = vst.msk [vmem:[%s148 + $0x20] sm:$0xff] %vm2859, %v2855
      %2865 = vst.msk [vmem:[%s148 + $0x28] sm:$0xff] %vm2859, %v2856
      %2866 = vst.msk [vmem:[%s148 + $0x30] sm:$0xff] %vm2859, %v2857
      %2867 = vst.msk [vmem:[%s148 + $0x38] sm:$0xff] %vm2859, %v2858
      %s2868 = smul.u32 8, %s13
      %p2869 = scmp.lt.s32.totalorder %s2868, 31
      %s2870 = scalar_select %p2869, %s2868, 31
      %s2871 = smul.addr %s2870, 8
      %s2872 = scalar_lea.vmem %s2, %s2871
      // Predicated region
      $region29: #{tpu_custom_call.1} parent=27 // pred_check
        %p2873 = pneg %p78
      $region30: #{tpu_custom_call.1} parent=27 // pred_check_branch
        %2875 = sbr.rel (%p2873) target = $region32
      $region31: #{tpu_custom_call.1} parent=27 // pred_region
        %s2876 = smul.u32 8, %s13
      $region32: #{tpu_custom_call.1} parent=27 // pred_fallthru
        _
    $region28: #{tpu_custom_call.1} parent=5 // pred_fallthru
      _
    %p2877 = scmp.le.s32.totalorder 2, %s8
    // Predicated region
    $region33: #{tpu_custom_call.1} parent=5 // pred_check
      %p2878 = pneg %p2877
    $region34: #{tpu_custom_call.1} parent=5 // pred_check_branch
      %2880 = sbr.rel (%p2878) target = $region36
    $region35: #{tpu_custom_call.1} parent=5 // pred_region
      %s2881 = ssub.s32 %s8, 2
      // Predicated region
      $region37: #{tpu_custom_call.1} parent=35 // pred_check
        %p2882 = pneg %p84
      $region38: #{tpu_custom_call.1} parent=35 // pred_check_branch
        %2884 = sbr.rel (%p2882) target = $region40
      $region39: #{tpu_custom_call.1} parent=35 // pred_region
        %s2885 = smul.u32 8, %s14
        %p2886 = scmp.lt.s32.totalorder %s2885, 31
        %s2887 = scalar_select %p2886, %s2885, 31
        %s2888 = smul.addr %s2887, 8
        %s2889 = scalar_lea.vmem %s2, %s2888
      $region40: #{tpu_custom_call.1} parent=35 // pred_fallthru
        _
    $region36: #{tpu_custom_call.1} parent=5 // pred_fallthru
      _
  $region6: #{tpu_custom_call.1} parent=0 // loop_footer
    %s12 = sadd.s32 1, %s8
  $region7: #{tpu_custom_call.1} parent=0 // loop_footer_branch
    %7 = sbr.rel target = $region3
  $region8: #{tpu_custom_call.1} parent=0 // loop_exit
    _

</llo_original>
